<compile_context>
chip_gen: v6e
topology: v6e:2x2x1
jax: 0.10.0
libtpu: 0.0.40
codegen_flags: <defaults>
</compile_context>

<pallas_src>
import numpy as np

import jax
import jax.numpy as jnp
from jax.experimental import pallas as pl
from jax.experimental.pallas import tpu as pltpu

# ----------------------------- configuration -------------------------------
B = 2                   # batch
C_IMG = 3               # image channels
IMG_HW = 16             # image spatial size
C_LAT = 4               # latent channels (SD uses 4)
LAT_HW = IMG_HW // 2    # latent spatial size (one 2x downsample)
HW = LAT_HW * LAT_HW    # latent pixels per image (64)
N_PIX = B * HW          # 128  -> the lane dimension everywhere
SEQ = 8                 # text sequence length
N_TOK = B * SEQ         # 16
HID = 32                # hidden / text-embedding width
VOCAB = 64
SCALING_FACTOR = 0.18215
NUM_TRAIN_TIMESTEPS = 1000
BETA_START, BETA_END = 1e-4, 2e-2

# ---------------- module-level precomputed constants (numpy) ----------------
_BETAS = np.linspace(BETA_START, BETA_END, NUM_TRAIN_TIMESTEPS, dtype=np.float32)
_ACP = np.cumprod(1.0 - _BETAS).astype(np.float32)
_SQRT_ACP = np.sqrt(_ACP).astype(np.float32)
_SQRT_1M_ACP = np.sqrt(1.0 - _ACP).astype(np.float32)

# 3x3 tap geometry (row-major taps, offsets relative to the center pixel).
_TAPS = [(t // 3 - 1, t % 3 - 1) for t in range(9)]


def _make_consts():
    """[25,128] constant slab: rows 0-8 conv boundary masks, rows 9-24 attn mask."""
    masks = np.zeros((9, N_PIX), np.float32)
    for t, (oi, oj) in enumerate(_TAPS):
        for b in range(B):
            for i in range(LAT_HW):
                for j in range(LAT_HW):
                    if 0 <= i + oi < LAT_HW and 0 <= j + oj < LAT_HW:
                        masks[t, b * HW + i * LAT_HW + j] = 1.0
    key_batch = np.arange(N_TOK) // SEQ
    qry_batch = np.arange(N_PIX) // HW
    amask = np.where(key_batch[:, None] == qry_batch[None, :], 0.0, -1e9)
    return np.concatenate([masks, amask.astype(np.float32)], axis=0)


_CONSTS = _make_consts()                              # [25, 128]


# ------------------------------ fused kernel --------------------------------
def _fused_diffusion_kernel(acts_ref, text_cm_ref, text_rm_ref, consts_ref,
                            w32_ref, wmisc_ref, bcm_ref, brm_ref, loss_ref):
    f32, bf16 = jnp.float32, jnp.bfloat16

    def mm(a, b):
        # standard-orientation MXU matmul, bf16 operands, f32 accumulation
        return jnp.dot(a, b, preferred_element_type=f32)

    acts = acts_ref[...]                              # [54,128] f32
    consts = consts_ref[...]                          # [25,128] f32
    w32 = w32_ref[...]                                # [32,292] bf16
    wmisc = wmisc_ref[...]                            # [ 8,300] bf16
    bcm = bcm_ref[...]                                # [32,  9] f32 (column biases)
    brm = brm_ref[...]                                # [ 2, 32] f32 (row biases)

    patches = acts[0:12, :]                           # [12,128]
    eps = acts[12:16, :]                              # [ 4,128]
    noise = acts[16:20, :]                            # [ 4,128]
    a_c = acts[20:21, :]                              # [ 1,128]
    b_c = acts[21:22, :]                              # [ 1,128]
    temb0 = acts[22:54, :]                            # [32,128] (pre-broadcast)

    # ---- VAE encode -> reparameterized sample -> SD latent scaling ----
    moments = mm(wmisc[0:8, 0:12], patches.astype(bf16)) + bcm[0:8, 0:1]   # [8,128]
    mean, logvar = moments[0:4, :], moments[4:8, :]
    latents = (mean + jnp.exp(0.5 * logvar) * eps) * SCALING_FACTOR        # [4,128]

    # ---- DDPM q_sample: sqrt(acp)*x0 + sqrt(1-acp)*noise ----
    noisy = a_c * latents + b_c * noise                                    # [4,128]

    # ---- text-encoder projection (both orientations; only standard GEMMs) ----
    text_cm = text_cm_ref[...].astype(bf16)                                # [32,16]
    text_rm = text_rm_ref[...].astype(bf16)                                # [16,32]
    tok_cm = mm(w32[:, 0:32], text_cm) + bcm[:, 1:2]                       # [32,16]
    tok_rm = mm(text_rm, w32[:, 32:64]) + brm[0:1, :]                      # [16,32]

    # ---- timestep-embedding MLP, lane-dense at N=128 (SiLU) ----
    t1 = mm(w32[:, 64:96], temb0.astype(bf16)) + bcm[:, 2:3]               # [32,128]
    t1 = t1 * jax.nn.sigmoid(t1)
    temb = mm(w32[:, 96:128], t1.astype(bf16)) + bcm[:, 3:4]               # [32,128]

    # ---- 3x3 "same" conv = 8 lane-rolls + boundary masks + ONE stacked GEMM --
    def conv3x3(x, w_st, bias_col):
        taps = []
        for t, (oi, oj) in enumerate(_TAPS):
            s = oi * LAT_HW + oj                      # element offset of the tap
            if s == 0:
                taps.append(x)                        # center tap: no shift, mask==1
            else:
                shifted = pltpu.roll(x, shift=(-s) % N_PIX, axis=1)
                taps.append(shifted * consts[t:t + 1, :])
        stack = jnp.concatenate(taps, axis=0).astype(bf16)   # [9*C, 128]
        return mm(w_st, stack) + bias_col

    # ---- UNet conv_in + temb + SiLU ----
    h = conv3x3(noisy, w32[:, 128:164], bcm[:, 4:5]) + temb                # [32,128]
    h = h * jax.nn.sigmoid(h)

    # ---- cross-attention over text tokens (residual); scale folded into Wq --
    q = mm(w32[:, 164:196], h.astype(bf16)) + bcm[:, 5:6]                  # [32,128]
    k = mm(tok_rm.astype(bf16), w32[:, 196:228]) + brm[1:2, :]             # [16,32]
    v = mm(w32[:, 228:260], tok_cm.astype(bf16)) + bcm[:, 6:7]             # [32,16]

    s = mm(k.astype(bf16), q.astype(bf16))                                 # [16,128]
    s = s + consts[9:25, :]                           # batch isolation (f32, pre-max)
    s = s - jnp.max(s, axis=0, keepdims=True)
    p = jnp.exp(s)
    p = p * pl.reciprocal(jnp.sum(p, axis=0, keepdims=True), approx=True)  # f32 softmax

    attn = mm(v.astype(bf16), p.astype(bf16))                              # [32,128]
    attn = mm(w32[:, 260:292], attn.astype(bf16)) + bcm[:, 7:8]            # [32,128]
    h = h + attn

    # ---- UNet conv_out -> epsilon prediction ----
    pred = conv3x3(h, wmisc[0:4, 12:300], bcm[0:4, 8:9])                   # [4,128]

    # ---- fused mean-MSE against the noise target ----
    d = pred - noise
    loss_ref[0, 0] = jnp.sum(d * d) * (1.0 / float(B * HW * C_LAT))


# ------------------------------- JAX glue -----------------------------------
def space_to_depth(x, r):
    """NHWC [B,H,W,C] -> [B,H/r,W/r,r*r*C] (2x2 stride-2 patchify for the VAE)."""
    b, h, w, c = x.shape
    x = x.reshape(b, h // r, r, w // r, r, c)
    x = jnp.transpose(x, (0, 1, 3, 2, 4, 5))
    return x.reshape(b, h // r, w // r, r * r * c)


def timestep_embedding(timesteps, dim):
    half = dim // 2
    freqs = jnp.exp(-jnp.log(10000.0) * jnp.arange(half, dtype=jnp.float32) / half)
    args = timesteps.astype(jnp.float32)[:, None] * freqs[None, :]
    return jnp.concatenate([jnp.cos(args), jnp.sin(args)], axis=-1)


def init_params(key):
    ks = jax.random.split(key, 16)
    w = lambda k, shape, s=0.05: s * jax.random.normal(k, shape, jnp.float32)
    z = lambda *shape: jnp.zeros(shape, jnp.float32)
    return {
        # VAE encoder: 2x2 stride-2 patch conv -> (mean, logvar)
        "vae_w": w(ks[0], (4 * C_IMG, 2 * C_LAT)), "vae_b": z(2 * C_LAT),
        # text encoder: embedding + projection
        "tok_emb": w(ks[1], (VOCAB, HID), 0.1),
        "txt_w": w(ks[2], (HID, HID)), "txt_b": z(HID),
        # UNet timestep MLP
        "time_w1": w(ks[3], (HID, HID)), "time_b1": z(HID),
        "time_w2": w(ks[4], (HID, HID)), "time_b2": z(HID),
        # UNet conv_in / cross-attn / conv_out  (conv weights stored per-tap)
        "conv_in_w": w(ks[5], (9, C_LAT, HID)), "conv_in_b": z(HID),
        "wq": w(ks[6], (HID, HID)), "bq": z(HID),
        "wk": w(ks[7], (HID, HID)), "bk": z(HID),
        "wv": w(ks[8], (HID, HID)), "bv": z(HID),
        "wo": w(ks[9], (HID, HID)), "bo": z(HID),
        "conv_out_w": w(ks[10], (9, HID, C_LAT)), "conv_out_b": z(C_LAT),
    }


def diffusion_forward(params, images, texts, key_eps, key_noise, key_t):
    f32, bf16 = jnp.float32, jnp.bfloat16

    # ---- activations, channels-major [C, B*HW] (lane-dense) ----
    x = jnp.transpose(images, (0, 2, 3, 1))                          # NCHW -> NHWC
    patches = space_to_depth(x, 2).reshape(N_PIX, 4 * C_IMG).T       # [12,128]
    eps = jax.random.normal(key_eps, (C_LAT, N_PIX), f32)            # [ 4,128]
    noise = jax.random.normal(key_noise, (C_LAT, N_PIX), f32)        # [ 4,128]

    timesteps = jax.random.randint(key_t, (B,), 0, NUM_TRAIN_TIMESTEPS)
    a_coef = jnp.take(jnp.asarray(_SQRT_ACP), timesteps)             # [B]
    b_coef = jnp.take(jnp.asarray(_SQRT_1M_ACP), timesteps)          # [B]
    ab = jnp.repeat(jnp.stack([a_coef, b_coef], axis=0), HW, axis=1)  # [2,128]

    temb0 = timestep_embedding(timesteps, HID)                       # [B,32]
    temb_bc = jnp.repeat(temb0, HW, axis=0).T                        # [32,128]

    acts = jnp.concatenate([patches, eps, noise, ab, temb_bc], axis=0)   # [54,128]

    text_rm = params["tok_emb"][texts].reshape(N_TOK, HID)           # [16,32]
    text_cm = text_rm.T                                              # [32,16]

    # ---- weight slabs, bf16, pre-transposed for channels-major GEMMs ----
    scale = 1.0 / float(np.sqrt(HID))                 # attn scale folded into q proj
    w_in_st = params["conv_in_w"].transpose(2, 0, 1).reshape(HID, 9 * C_LAT)    # [32,36]
    w_out_st = params["conv_out_w"].transpose(2, 0, 1).reshape(C_LAT, 9 * HID)  # [4,288]
    w32 = jnp.concatenate([
        params["txt_w"].T,          # cols   0: 32  (text proj, channels-major)
        params["txt_w"],            # cols  32: 64  (text proj, row-major)
        params["time_w1"].T,        # cols  64: 96
        params["time_w2"].T,        # cols  96:128
        w_in_st,                    # cols 128:164  (conv_in stacked taps)
        params["wq"].T * scale,     # cols 164:196
        params["wk"],               # cols 196:228  (row-major k path)
        params["wv"].T,             # cols 228:260
        params["wo"].T,             # cols 260:292
    ], axis=1).astype(bf16)                                          # [32,292]
    w_misc = jnp.concatenate([
        params["vae_w"].T,                                           # cols 0:12
        jnp.pad(w_out_st, ((0, 8 - C_LAT), (0, 0))),                 # cols 12:300
    ], axis=1).astype(bf16)                                          # [ 8,300]

    def col(v):
        v = v.reshape(-1)
        return jnp.pad(v, (0, HID - v.shape[0])).reshape(HID, 1)

    biases_cm = jnp.concatenate([
        col(params["vae_b"]),            # 0 (8 rows used)
        col(params["txt_b"]),            # 1
        col(params["time_b1"]),          # 2
        col(params["time_b2"]),          # 3
        col(params["conv_in_b"]),        # 4
        col(params["bq"] * scale),       # 5
        col(params["bv"]),               # 6
        col(params["bo"]),               # 7
        col(params["conv_out_b"]),       # 8 (4 rows used)
    ], axis=1).astype(f32)                                           # [32,9]
    biases_rm = jnp.stack([params["txt_b"], params["bk"]], axis=0)   # [ 2,32]

    consts = jnp.asarray(_CONSTS)                                    # [25,128]

    loss = pl.pallas_call(
        _fused_diffusion_kernel,
        out_shape=jax.ShapeDtypeStruct((1, 1), jnp.float32),
        out_specs=pl.BlockSpec(memory_space=pltpu.MemorySpace.SMEM),
    )(acts, text_cm, text_rm, consts, w32, w_misc, biases_cm, biases_rm)
    return loss[0, 0]


if __name__ == "__main__":
    key = jax.random.PRNGKey(0)
    k_img, k_txt, k_eps, k_noise, k_t = jax.random.split(key, 5)
    images = jax.random.normal(k_img, (B, C_IMG, IMG_HW, IMG_HW), jnp.float32)  # NCHW
    texts = jax.random.randint(k_txt, (B, SEQ), 0, VOCAB)
    params = init_params(jax.random.PRNGKey(42))

    loss = jax.jit(diffusion_forward)(params, images, texts, k_eps, k_noise, k_t)
    loss = jax.block_until_ready(loss)
    assert loss.shape == () and jnp.isfinite(loss)
    print("KERNEL_OK")
</pallas_src>

<mosaic_0001>
module attributes {stable_mosaic.version = 11 : i64} {
  func.func @_fused_diffusion_kernel(%arg0: memref<54x128xf32, #tpu.memory_space<vmem>>, %arg1: memref<32x16xf32, #tpu.memory_space<vmem>>, %arg2: memref<16x32xf32, #tpu.memory_space<vmem>>, %arg3: memref<25x128xf32, #tpu.memory_space<vmem>>, %arg4: memref<32x292xbf16, #tpu.memory_space<vmem>>, %arg5: memref<8x300xbf16, #tpu.memory_space<vmem>>, %arg6: memref<32x9xf32, #tpu.memory_space<vmem>>, %arg7: memref<2x32xf32, #tpu.memory_space<vmem>>, %arg8: memref<1x1xf32, #tpu.memory_space<smem>>) attributes {dimension_semantics = [], scalar_prefetch = 0 : i64, scratch_operands = 0 : i64, tpu.core_type = #tpu.core_type<tc>} {
    %c0 = arith.constant 0 : index
    %c0_0 = arith.constant 0 : index
    %0 = vector.load %arg0[%c0, %c0_0] : memref<54x128xf32, #tpu.memory_space<vmem>>, vector<54x128xf32>
    %c0_1 = arith.constant 0 : index
    %c0_2 = arith.constant 0 : index
    %1 = vector.load %arg3[%c0_1, %c0_2] : memref<25x128xf32, #tpu.memory_space<vmem>>, vector<25x128xf32>
    %c0_3 = arith.constant 0 : index
    %c0_4 = arith.constant 0 : index
    %2 = vector.load %arg4[%c0_3, %c0_4] : memref<32x292xbf16, #tpu.memory_space<vmem>>, vector<32x292xbf16>
    %c0_5 = arith.constant 0 : index
    %c0_6 = arith.constant 0 : index
    %3 = vector.load %arg5[%c0_5, %c0_6] : memref<8x300xbf16, #tpu.memory_space<vmem>>, vector<8x300xbf16>
    %c0_7 = arith.constant 0 : index
    %c0_8 = arith.constant 0 : index
    %4 = vector.load %arg6[%c0_7, %c0_8] : memref<32x9xf32, #tpu.memory_space<vmem>>, vector<32x9xf32>
    %c0_9 = arith.constant 0 : index
    %c0_10 = arith.constant 0 : index
    %5 = vector.load %arg7[%c0_9, %c0_10] : memref<2x32xf32, #tpu.memory_space<vmem>>, vector<2x32xf32>
    %6 = vector.extract_strided_slice %0 {offsets = [0, 0], sizes = [12, 128], strides = [1, 1]} : vector<54x128xf32> to vector<12x128xf32>
    %7 = vector.extract_strided_slice %0 {offsets = [12, 0], sizes = [4, 128], strides = [1, 1]} : vector<54x128xf32> to vector<4x128xf32>
    %8 = vector.extract_strided_slice %0 {offsets = [16, 0], sizes = [4, 128], strides = [1, 1]} : vector<54x128xf32> to vector<4x128xf32>
    %9 = vector.extract_strided_slice %0 {offsets = [20, 0], sizes = [1, 128], strides = [1, 1]} : vector<54x128xf32> to vector<1x128xf32>
    %10 = vector.extract_strided_slice %0 {offsets = [21, 0], sizes = [1, 128], strides = [1, 1]} : vector<54x128xf32> to vector<1x128xf32>
    %11 = vector.extract_strided_slice %0 {offsets = [22, 0], sizes = [32, 128], strides = [1, 1]} : vector<54x128xf32> to vector<32x128xf32>
    %12 = vector.extract_strided_slice %3 {offsets = [0, 0], sizes = [8, 12], strides = [1, 1]} : vector<8x300xbf16> to vector<8x12xbf16>
    %13 = arith.truncf %6 : vector<12x128xf32> to vector<12x128xbf16>
    %cst = arith.constant dense<0.000000e+00> : vector<8x128xf32>
    %14 = tpu.matmul %12, %13, %cst {dimension_numbers = #tpu.dot_dimension_numbers<[1], [0], [0], [1], [0, 0, 1, 1], [], []>} : vector<8x12xbf16>, vector<12x128xbf16>, vector<8x128xf32> -> vector<8x128xf32>
    %15 = vector.extract_strided_slice %4 {offsets = [0, 0], sizes = [8, 1], strides = [1, 1]} : vector<32x9xf32> to vector<8x1xf32>
    %16 = vector.broadcast %15 : vector<8x1xf32> to vector<8x128xf32>
    %17 = arith.addf %14, %16 : vector<8x128xf32>
    %18 = vector.extract_strided_slice %17 {offsets = [0, 0], sizes = [4, 128], strides = [1, 1]} : vector<8x128xf32> to vector<4x128xf32>
    %19 = vector.extract_strided_slice %17 {offsets = [4, 0], sizes = [4, 128], strides = [1, 1]} : vector<8x128xf32> to vector<4x128xf32>
    %cst_11 = arith.constant 5.000000e-01 : f32
    %20 = vector.broadcast %cst_11 : f32 to vector<4x128xf32>
    %21 = arith.mulf %20, %19 : vector<4x128xf32>
    %22 = math.exp %21 : vector<4x128xf32>
    %23 = arith.mulf %22, %7 : vector<4x128xf32>
    %24 = arith.addf %18, %23 : vector<4x128xf32>
    %cst_12 = arith.constant 1.821500e-01 : f32
    %25 = vector.broadcast %cst_12 : f32 to vector<4x128xf32>
    %26 = arith.mulf %24, %25 : vector<4x128xf32>
    %27 = vector.broadcast %9 : vector<1x128xf32> to vector<4x128xf32>
    %28 = arith.mulf %27, %26 : vector<4x128xf32>
    %29 = vector.broadcast %10 : vector<1x128xf32> to vector<4x128xf32>
    %30 = arith.mulf %29, %8 : vector<4x128xf32>
    %31 = arith.addf %28, %30 : vector<4x128xf32>
    %c0_13 = arith.constant 0 : index
    %c0_14 = arith.constant 0 : index
    %32 = vector.load %arg1[%c0_13, %c0_14] : memref<32x16xf32, #tpu.memory_space<vmem>>, vector<32x16xf32>
    %33 = arith.truncf %32 : vector<32x16xf32> to vector<32x16xbf16>
    %c0_15 = arith.constant 0 : index
    %c0_16 = arith.constant 0 : index
    %34 = vector.load %arg2[%c0_15, %c0_16] : memref<16x32xf32, #tpu.memory_space<vmem>>, vector<16x32xf32>
    %35 = arith.truncf %34 : vector<16x32xf32> to vector<16x32xbf16>
    %36 = vector.extract_strided_slice %2 {offsets = [0, 0], sizes = [32, 32], strides = [1, 1]} : vector<32x292xbf16> to vector<32x32xbf16>
    %cst_17 = arith.constant dense<0.000000e+00> : vector<32x16xf32>
    %37 = tpu.matmul %36, %33, %cst_17 {dimension_numbers = #tpu.dot_dimension_numbers<[1], [0], [0], [1], [0, 0, 1, 1], [], []>} : vector<32x32xbf16>, vector<32x16xbf16>, vector<32x16xf32> -> vector<32x16xf32>
    %38 = vector.extract_strided_slice %4 {offsets = [0, 1], sizes = [32, 1], strides = [1, 1]} : vector<32x9xf32> to vector<32x1xf32>
    %39 = vector.broadcast %38 : vector<32x1xf32> to vector<32x16xf32>
    %40 = arith.addf %37, %39 : vector<32x16xf32>
    %41 = vector.extract_strided_slice %2 {offsets = [0, 32], sizes = [32, 32], strides = [1, 1]} : vector<32x292xbf16> to vector<32x32xbf16>
    %cst_18 = arith.constant dense<0.000000e+00> : vector<16x32xf32>
    %42 = tpu.matmul %35, %41, %cst_18 {dimension_numbers = #tpu.dot_dimension_numbers<[1], [0], [0], [1], [0, 0, 1, 1], [], []>} : vector<16x32xbf16>, vector<32x32xbf16>, vector<16x32xf32> -> vector<16x32xf32>
    %43 = vector.extract_strided_slice %5 {offsets = [0, 0], sizes = [1, 32], strides = [1, 1]} : vector<2x32xf32> to vector<1x32xf32>
    %44 = vector.broadcast %43 : vector<1x32xf32> to vector<16x32xf32>
    %45 = arith.addf %42, %44 : vector<16x32xf32>
    %46 = vector.extract_strided_slice %2 {offsets = [0, 64], sizes = [32, 32], strides = [1, 1]} : vector<32x292xbf16> to vector<32x32xbf16>
    %47 = arith.truncf %11 : vector<32x128xf32> to vector<32x128xbf16>
    %cst_19 = arith.constant dense<0.000000e+00> : vector<32x128xf32>
    %48 = tpu.matmul %46, %47, %cst_19 {dimension_numbers = #tpu.dot_dimension_numbers<[1], [0], [0], [1], [0, 0, 1, 1], [], []>} : vector<32x32xbf16>, vector<32x128xbf16>, vector<32x128xf32> -> vector<32x128xf32>
    %49 = vector.extract_strided_slice %4 {offsets = [0, 2], sizes = [32, 1], strides = [1, 1]} : vector<32x9xf32> to vector<32x1xf32>
    %50 = vector.broadcast %49 : vector<32x1xf32> to vector<32x128xf32>
    %51 = arith.addf %48, %50 : vector<32x128xf32>
    %52 = arith.negf %51 : vector<32x128xf32>
    %53 = math.exp %52 : vector<32x128xf32>
    %cst_20 = arith.constant 1.000000e+00 : f32
    %54 = vector.broadcast %cst_20 : f32 to vector<32x128xf32>
    %55 = arith.addf %54, %53 : vector<32x128xf32>
    %56 = arith.divf %54, %55 : vector<32x128xf32>
    %57 = arith.mulf %51, %56 : vector<32x128xf32>
    %58 = vector.extract_strided_slice %2 {offsets = [0, 96], sizes = [32, 32], strides = [1, 1]} : vector<32x292xbf16> to vector<32x32xbf16>
    %59 = arith.truncf %57 : vector<32x128xf32> to vector<32x128xbf16>
    %cst_21 = arith.constant dense<0.000000e+00> : vector<32x128xf32>
    %60 = tpu.matmul %58, %59, %cst_21 {dimension_numbers = #tpu.dot_dimension_numbers<[1], [0], [0], [1], [0, 0, 1, 1], [], []>} : vector<32x32xbf16>, vector<32x128xbf16>, vector<32x128xf32> -> vector<32x128xf32>
    %61 = vector.extract_strided_slice %4 {offsets = [0, 3], sizes = [32, 1], strides = [1, 1]} : vector<32x9xf32> to vector<32x1xf32>
    %62 = vector.broadcast %61 : vector<32x1xf32> to vector<32x128xf32>
    %63 = arith.addf %60, %62 : vector<32x128xf32>
    %64 = vector.extract_strided_slice %2 {offsets = [0, 128], sizes = [32, 36], strides = [1, 1]} : vector<32x292xbf16> to vector<32x36xbf16>
    %65 = vector.extract_strided_slice %4 {offsets = [0, 4], sizes = [32, 1], strides = [1, 1]} : vector<32x9xf32> to vector<32x1xf32>
    %c9_i32 = arith.constant 9 : i32
    %66 = tpu.dynamic_rotate %31 by %c9_i32 dim 1 : vector<4x128xf32>, i32 -> vector<4x128xf32>
    %67 = vector.extract_strided_slice %1 {offsets = [0, 0], sizes = [1, 128], strides = [1, 1]} : vector<25x128xf32> to vector<1x128xf32>
    %68 = vector.broadcast %67 : vector<1x128xf32> to vector<4x128xf32>
    %69 = arith.mulf %66, %68 : vector<4x128xf32>
    %c8_i32 = arith.constant 8 : i32
    %70 = tpu.dynamic_rotate %31 by %c8_i32 dim 1 : vector<4x128xf32>, i32 -> vector<4x128xf32>
    %71 = vector.extract_strided_slice %1 {offsets = [1, 0], sizes = [1, 128], strides = [1, 1]} : vector<25x128xf32> to vector<1x128xf32>
    %72 = vector.broadcast %71 : vector<1x128xf32> to vector<4x128xf32>
    %73 = arith.mulf %70, %72 : vector<4x128xf32>
    %c7_i32 = arith.constant 7 : i32
    %74 = tpu.dynamic_rotate %31 by %c7_i32 dim 1 : vector<4x128xf32>, i32 -> vector<4x128xf32>
    %75 = vector.extract_strided_slice %1 {offsets = [2, 0], sizes = [1, 128], strides = [1, 1]} : vector<25x128xf32> to vector<1x128xf32>
    %76 = vector.broadcast %75 : vector<1x128xf32> to vector<4x128xf32>
    %77 = arith.mulf %74, %76 : vector<4x128xf32>
    %c1_i32 = arith.constant 1 : i32
    %78 = tpu.dynamic_rotate %31 by %c1_i32 dim 1 : vector<4x128xf32>, i32 -> vector<4x128xf32>
    %79 = vector.extract_strided_slice %1 {offsets = [3, 0], sizes = [1, 128], strides = [1, 1]} : vector<25x128xf32> to vector<1x128xf32>
    %80 = vector.broadcast %79 : vector<1x128xf32> to vector<4x128xf32>
    %81 = arith.mulf %78, %80 : vector<4x128xf32>
    %c127_i32 = arith.constant 127 : i32
    %82 = tpu.dynamic_rotate %31 by %c127_i32 dim 1 : vector<4x128xf32>, i32 -> vector<4x128xf32>
    %83 = vector.extract_strided_slice %1 {offsets = [5, 0], sizes = [1, 128], strides = [1, 1]} : vector<25x128xf32> to vector<1x128xf32>
    %84 = vector.broadcast %83 : vector<1x128xf32> to vector<4x128xf32>
    %85 = arith.mulf %82, %84 : vector<4x128xf32>
    %c121_i32 = arith.constant 121 : i32
    %86 = tpu.dynamic_rotate %31 by %c121_i32 dim 1 : vector<4x128xf32>, i32 -> vector<4x128xf32>
    %87 = vector.extract_strided_slice %1 {offsets = [6, 0], sizes = [1, 128], strides = [1, 1]} : vector<25x128xf32> to vector<1x128xf32>
    %88 = vector.broadcast %87 : vector<1x128xf32> to vector<4x128xf32>
    %89 = arith.mulf %86, %88 : vector<4x128xf32>
    %c120_i32 = arith.constant 120 : i32
    %90 = tpu.dynamic_rotate %31 by %c120_i32 dim 1 : vector<4x128xf32>, i32 -> vector<4x128xf32>
    %91 = vector.extract_strided_slice %1 {offsets = [7, 0], sizes = [1, 128], strides = [1, 1]} : vector<25x128xf32> to vector<1x128xf32>
    %92 = vector.broadcast %91 : vector<1x128xf32> to vector<4x128xf32>
    %93 = arith.mulf %90, %92 : vector<4x128xf32>
    %c119_i32 = arith.constant 119 : i32
    %94 = tpu.dynamic_rotate %31 by %c119_i32 dim 1 : vector<4x128xf32>, i32 -> vector<4x128xf32>
    %95 = vector.extract_strided_slice %1 {offsets = [8, 0], sizes = [1, 128], strides = [1, 1]} : vector<25x128xf32> to vector<1x128xf32>
    %96 = vector.broadcast %95 : vector<1x128xf32> to vector<4x128xf32>
    %97 = arith.mulf %94, %96 : vector<4x128xf32>
    %98 = tpu.concatenate %69, %73, %77, %81, %31, %85, %89, %93, %97 in 0 : vector<4x128xf32>, vector<4x128xf32>, vector<4x128xf32>, vector<4x128xf32>, vector<4x128xf32>, vector<4x128xf32>, vector<4x128xf32>, vector<4x128xf32>, vector<4x128xf32> -> vector<36x128xf32>
    %99 = arith.truncf %98 : vector<36x128xf32> to vector<36x128xbf16>
    %cst_22 = arith.constant dense<0.000000e+00> : vector<32x128xf32>
    %100 = tpu.matmul %64, %99, %cst_22 {dimension_numbers = #tpu.dot_dimension_numbers<[1], [0], [0], [1], [0, 0, 1, 1], [], []>} : vector<32x36xbf16>, vector<36x128xbf16>, vector<32x128xf32> -> vector<32x128xf32>
    %101 = vector.broadcast %65 : vector<32x1xf32> to vector<32x128xf32>
    %102 = arith.addf %100, %101 : vector<32x128xf32>
    %103 = arith.addf %102, %63 : vector<32x128xf32>
    %104 = arith.negf %103 : vector<32x128xf32>
    %105 = math.exp %104 : vector<32x128xf32>
    %cst_23 = arith.constant 1.000000e+00 : f32
    %106 = vector.broadcast %cst_23 : f32 to vector<32x128xf32>
    %107 = arith.addf %106, %105 : vector<32x128xf32>
    %108 = arith.divf %106, %107 : vector<32x128xf32>
    %109 = arith.mulf %103, %108 : vector<32x128xf32>
    %110 = vector.extract_strided_slice %2 {offsets = [0, 164], sizes = [32, 32], strides = [1, 1]} : vector<32x292xbf16> to vector<32x32xbf16>
    %111 = arith.truncf %109 : vector<32x128xf32> to vector<32x128xbf16>
    %cst_24 = arith.constant dense<0.000000e+00> : vector<32x128xf32>
    %112 = tpu.matmul %110, %111, %cst_24 {dimension_numbers = #tpu.dot_dimension_numbers<[1], [0], [0], [1], [0, 0, 1, 1], [], []>} : vector<32x32xbf16>, vector<32x128xbf16>, vector<32x128xf32> -> vector<32x128xf32>
    %113 = vector.extract_strided_slice %4 {offsets = [0, 5], sizes = [32, 1], strides = [1, 1]} : vector<32x9xf32> to vector<32x1xf32>
    %114 = vector.broadcast %113 : vector<32x1xf32> to vector<32x128xf32>
    %115 = arith.addf %112, %114 : vector<32x128xf32>
    %116 = arith.truncf %45 : vector<16x32xf32> to vector<16x32xbf16>
    %117 = vector.extract_strided_slice %2 {offsets = [0, 196], sizes = [32, 32], strides = [1, 1]} : vector<32x292xbf16> to vector<32x32xbf16>
    %cst_25 = arith.constant dense<0.000000e+00> : vector<16x32xf32>
    %118 = tpu.matmul %116, %117, %cst_25 {dimension_numbers = #tpu.dot_dimension_numbers<[1], [0], [0], [1], [0, 0, 1, 1], [], []>} : vector<16x32xbf16>, vector<32x32xbf16>, vector<16x32xf32> -> vector<16x32xf32>
    %119 = vector.extract_strided_slice %5 {offsets = [1, 0], sizes = [1, 32], strides = [1, 1]} : vector<2x32xf32> to vector<1x32xf32>
    %120 = vector.broadcast %119 : vector<1x32xf32> to vector<16x32xf32>
    %121 = arith.addf %118, %120 : vector<16x32xf32>
    %122 = vector.extract_strided_slice %2 {offsets = [0, 228], sizes = [32, 32], strides = [1, 1]} : vector<32x292xbf16> to vector<32x32xbf16>
    %123 = arith.truncf %40 : vector<32x16xf32> to vector<32x16xbf16>
    %cst_26 = arith.constant dense<0.000000e+00> : vector<32x16xf32>
    %124 = tpu.matmul %122, %123, %cst_26 {dimension_numbers = #tpu.dot_dimension_numbers<[1], [0], [0], [1], [0, 0, 1, 1], [], []>} : vector<32x32xbf16>, vector<32x16xbf16>, vector<32x16xf32> -> vector<32x16xf32>
    %125 = vector.extract_strided_slice %4 {offsets = [0, 6], sizes = [32, 1], strides = [1, 1]} : vector<32x9xf32> to vector<32x1xf32>
    %126 = vector.broadcast %125 : vector<32x1xf32> to vector<32x16xf32>
    %127 = arith.addf %124, %126 : vector<32x16xf32>
    %128 = arith.truncf %121 : vector<16x32xf32> to vector<16x32xbf16>
    %129 = arith.truncf %115 : vector<32x128xf32> to vector<32x128xbf16>
    %cst_27 = arith.constant dense<0.000000e+00> : vector<16x128xf32>
    %130 = tpu.matmul %128, %129, %cst_27 {dimension_numbers = #tpu.dot_dimension_numbers<[1], [0], [0], [1], [0, 0, 1, 1], [], []>} : vector<16x32xbf16>, vector<32x128xbf16>, vector<16x128xf32> -> vector<16x128xf32>
    %131 = vector.extract_strided_slice %1 {offsets = [9, 0], sizes = [16, 128], strides = [1, 1]} : vector<25x128xf32> to vector<16x128xf32>
    %132 = arith.addf %130, %131 : vector<16x128xf32>
    %cst_28 = arith.constant dense<0xFF800000> : vector<128xf32>
    %133 = vector.multi_reduction <maximumf>, %132, %cst_28 [0] : vector<16x128xf32> to vector<128xf32>
    %134 = vector.shape_cast %133 : vector<128xf32> to vector<1x128xf32>
    %135 = vector.broadcast %134 : vector<1x128xf32> to vector<16x128xf32>
    %136 = arith.subf %132, %135 : vector<16x128xf32>
    %137 = math.exp %136 : vector<16x128xf32>
    %cst_29 = arith.constant dense<0.000000e+00> : vector<128xf32>
    %138 = vector.multi_reduction <add>, %137, %cst_29 [0] : vector<16x128xf32> to vector<128xf32>
    %139 = vector.shape_cast %138 : vector<128xf32> to vector<1x128xf32>
    %140 = tpu.reciprocal %139 {approx = true} : vector<1x128xf32> -> vector<1x128xf32>
    %141 = vector.broadcast %140 : vector<1x128xf32> to vector<16x128xf32>
    %142 = arith.mulf %137, %141 : vector<16x128xf32>
    %143 = arith.truncf %127 : vector<32x16xf32> to vector<32x16xbf16>
    %144 = arith.truncf %142 : vector<16x128xf32> to vector<16x128xbf16>
    %cst_30 = arith.constant dense<0.000000e+00> : vector<32x128xf32>
    %145 = tpu.matmul %143, %144, %cst_30 {dimension_numbers = #tpu.dot_dimension_numbers<[1], [0], [0], [1], [0, 0, 1, 1], [], []>} : vector<32x16xbf16>, vector<16x128xbf16>, vector<32x128xf32> -> vector<32x128xf32>
    %146 = vector.extract_strided_slice %2 {offsets = [0, 260], sizes = [32, 32], strides = [1, 1]} : vector<32x292xbf16> to vector<32x32xbf16>
    %147 = arith.truncf %145 : vector<32x128xf32> to vector<32x128xbf16>
    %cst_31 = arith.constant dense<0.000000e+00> : vector<32x128xf32>
    %148 = tpu.matmul %146, %147, %cst_31 {dimension_numbers = #tpu.dot_dimension_numbers<[1], [0], [0], [1], [0, 0, 1, 1], [], []>} : vector<32x32xbf16>, vector<32x128xbf16>, vector<32x128xf32> -> vector<32x128xf32>
    %149 = vector.extract_strided_slice %4 {offsets = [0, 7], sizes = [32, 1], strides = [1, 1]} : vector<32x9xf32> to vector<32x1xf32>
    %150 = vector.broadcast %149 : vector<32x1xf32> to vector<32x128xf32>
    %151 = arith.addf %148, %150 : vector<32x128xf32>
    %152 = arith.addf %109, %151 : vector<32x128xf32>
    %153 = vector.extract_strided_slice %3 {offsets = [0, 12], sizes = [4, 288], strides = [1, 1]} : vector<8x300xbf16> to vector<4x288xbf16>
    %154 = vector.extract_strided_slice %4 {offsets = [0, 8], sizes = [4, 1], strides = [1, 1]} : vector<32x9xf32> to vector<4x1xf32>
    %c9_i32_32 = arith.constant 9 : i32
    %155 = tpu.dynamic_rotate %152 by %c9_i32_32 dim 1 : vector<32x128xf32>, i32 -> vector<32x128xf32>
    %156 = vector.extract_strided_slice %1 {offsets = [0, 0], sizes = [1, 128], strides = [1, 1]} : vector<25x128xf32> to vector<1x128xf32>
    %157 = vector.broadcast %156 : vector<1x128xf32> to vector<32x128xf32>
    %158 = arith.mulf %155, %157 : vector<32x128xf32>
    %c8_i32_33 = arith.constant 8 : i32
    %159 = tpu.dynamic_rotate %152 by %c8_i32_33 dim 1 : vector<32x128xf32>, i32 -> vector<32x128xf32>
    %160 = vector.extract_strided_slice %1 {offsets = [1, 0], sizes = [1, 128], strides = [1, 1]} : vector<25x128xf32> to vector<1x128xf32>
    %161 = vector.broadcast %160 : vector<1x128xf32> to vector<32x128xf32>
    %162 = arith.mulf %159, %161 : vector<32x128xf32>
    %c7_i32_34 = arith.constant 7 : i32
    %163 = tpu.dynamic_rotate %152 by %c7_i32_34 dim 1 : vector<32x128xf32>, i32 -> vector<32x128xf32>
    %164 = vector.extract_strided_slice %1 {offsets = [2, 0], sizes = [1, 128], strides = [1, 1]} : vector<25x128xf32> to vector<1x128xf32>
    %165 = vector.broadcast %164 : vector<1x128xf32> to vector<32x128xf32>
    %166 = arith.mulf %163, %165 : vector<32x128xf32>
    %c1_i32_35 = arith.constant 1 : i32
    %167 = tpu.dynamic_rotate %152 by %c1_i32_35 dim 1 : vector<32x128xf32>, i32 -> vector<32x128xf32>
    %168 = vector.extract_strided_slice %1 {offsets = [3, 0], sizes = [1, 128], strides = [1, 1]} : vector<25x128xf32> to vector<1x128xf32>
    %169 = vector.broadcast %168 : vector<1x128xf32> to vector<32x128xf32>
    %170 = arith.mulf %167, %169 : vector<32x128xf32>
    %c127_i32_36 = arith.constant 127 : i32
    %171 = tpu.dynamic_rotate %152 by %c127_i32_36 dim 1 : vector<32x128xf32>, i32 -> vector<32x128xf32>
    %172 = vector.extract_strided_slice %1 {offsets = [5, 0], sizes = [1, 128], strides = [1, 1]} : vector<25x128xf32> to vector<1x128xf32>
    %173 = vector.broadcast %172 : vector<1x128xf32> to vector<32x128xf32>
    %174 = arith.mulf %171, %173 : vector<32x128xf32>
    %c121_i32_37 = arith.constant 121 : i32
    %175 = tpu.dynamic_rotate %152 by %c121_i32_37 dim 1 : vector<32x128xf32>, i32 -> vector<32x128xf32>
    %176 = vector.extract_strided_slice %1 {offsets = [6, 0], sizes = [1, 128], strides = [1, 1]} : vector<25x128xf32> to vector<1x128xf32>
    %177 = vector.broadcast %176 : vector<1x128xf32> to vector<32x128xf32>
    %178 = arith.mulf %175, %177 : vector<32x128xf32>
    %c120_i32_38 = arith.constant 120 : i32
    %179 = tpu.dynamic_rotate %152 by %c120_i32_38 dim 1 : vector<32x128xf32>, i32 -> vector<32x128xf32>
    %180 = vector.extract_strided_slice %1 {offsets = [7, 0], sizes = [1, 128], strides = [1, 1]} : vector<25x128xf32> to vector<1x128xf32>
    %181 = vector.broadcast %180 : vector<1x128xf32> to vector<32x128xf32>
    %182 = arith.mulf %179, %181 : vector<32x128xf32>
    %c119_i32_39 = arith.constant 119 : i32
    %183 = tpu.dynamic_rotate %152 by %c119_i32_39 dim 1 : vector<32x128xf32>, i32 -> vector<32x128xf32>
    %184 = vector.extract_strided_slice %1 {offsets = [8, 0], sizes = [1, 128], strides = [1, 1]} : vector<25x128xf32> to vector<1x128xf32>
    %185 = vector.broadcast %184 : vector<1x128xf32> to vector<32x128xf32>
    %186 = arith.mulf %183, %185 : vector<32x128xf32>
    %187 = tpu.concatenate %158, %162, %166, %170, %152, %174, %178, %182, %186 in 0 : vector<32x128xf32>, vector<32x128xf32>, vector<32x128xf32>, vector<32x128xf32>, vector<32x128xf32>, vector<32x128xf32>, vector<32x128xf32>, vector<32x128xf32>, vector<32x128xf32> -> vector<288x128xf32>
    %188 = arith.truncf %187 : vector<288x128xf32> to vector<288x128xbf16>
    %cst_40 = arith.constant dense<0.000000e+00> : vector<4x128xf32>
    %189 = tpu.matmul %153, %188, %cst_40 {dimension_numbers = #tpu.dot_dimension_numbers<[1], [0], [0], [1], [0, 0, 1, 1], [], []>} : vector<4x288xbf16>, vector<288x128xbf16>, vector<4x128xf32> -> vector<4x128xf32>
    %190 = vector.broadcast %154 : vector<4x1xf32> to vector<4x128xf32>
    %191 = arith.addf %189, %190 : vector<4x128xf32>
    %192 = arith.subf %191, %8 : vector<4x128xf32>
    %193 = arith.mulf %192, %192 : vector<4x128xf32>
    %194 = vector.shape_cast %193 : vector<4x128xf32> to vector<1x4x128xf32>
    %cst_41 = arith.constant dense<0.000000e+00> : vector<1xf32>
    %195 = vector.multi_reduction <add>, %194, %cst_41 [1, 2] : vector<1x4x128xf32> to vector<1xf32>
    %196 = vector.shape_cast %195 : vector<1xf32> to vector<1x1x1xf32>
    %197 = vector.extract %196[0, 0, 0] : f32 from vector<1x1x1xf32>
    %cst_42 = arith.constant 0.001953125 : f32
    %198 = arith.mulf %197, %cst_42 : f32
    %c0_43 = arith.constant 0 : index
    %c0_44 = arith.constant 0 : index
    %199 = memref.load %arg8[%c0_43, %c0_44] : memref<1x1xf32, #tpu.memory_space<smem>>
    memref.store %198, %arg8[%c0_43, %c0_44] : memref<1x1xf32, #tpu.memory_space<smem>>
    return
  }
}

</mosaic_0001>

<llo_original>
// kernel: diffusion_forward.1
$region0: #{diffusion_forward.1}
  #allocation0 [shape = 'u32[]', space=smem, size = 0x4, offset = 0x4, fixed_abs, tag = 'smem constant byte address 0x4 - core index']
  #allocation1 [shape = 'u32[144,128]{1,0:T(1,128)}', space=vmem, size = 0x12000, scoped, tag = 'internal scratch']
  %s0 = inlined_call_operand.vmem [shape: f32[54,128], index: 0, kind: input, shape index: {}]
  %s1 = inlined_call_operand.vmem [shape: f32[32,16], index: 1, kind: input, shape index: {}]
  %s2 = inlined_call_operand.vmem [shape: f32[16,32], index: 2, kind: input, shape index: {}]
  %s3 = inlined_call_operand.vmem [shape: f32[25,128], index: 3, kind: input, shape index: {}]
  %s4 = inlined_call_operand.vmem [shape: bf16[32,292], index: 4, kind: input, shape index: {}]
  %s5 = inlined_call_operand.vmem [shape: bf16[8,300], index: 5, kind: input, shape index: {}]
  %s6 = inlined_call_operand.vmem [shape: f32[32,9], index: 6, kind: input, shape index: {}]
  %s7 = inlined_call_operand.vmem [shape: f32[2,32], index: 7, kind: input, shape index: {}]
  %s8 = inlined_call_operand.hbm [shape: f32[1,1], index: 8, kind: output, shape index: {}]
  %s9 = sld [smem:[#allocation0]]
  $region42: #{diffusion_forward.1} parent=0
    _
  %s11 = ssub.s32 1, %s9
  %s12 = scalar_select 0, %s11, %s9
  $region1: #{diffusion_forward.1} parent=0
    #allocation2 [shape = 'u8[512]{0}', space=smem, size = 0x200, scoped, tag = 'output window, operand 0, single buffered']
    #allocation3 [shape = 's32[1]{0}', space=sflag, size = 0x4, scoped, tag = 'scoped memory for diffusion_forward.1']
    %13 = vsyncpa [#allocation3], 0
    // Predicated region
    $region2: #{diffusion_forward.1} parent=1 // pred_check
      _
    $region3: #{diffusion_forward.1} parent=1 // pred_check_branch
      %15 = sbr.rel (0) target = $region5
    $region4: #{diffusion_forward.1} parent=1 // pred_region
      _
    $region5: #{diffusion_forward.1} parent=1 // pred_fallthru
      _
    // Predicated region
    $region6: #{diffusion_forward.1} parent=1 // pred_check
      _
    $region7: #{diffusion_forward.1} parent=1 // pred_check_branch
      %17 = sbr.rel (0) target = $region9
    $region8: #{diffusion_forward.1} parent=1 // pred_region
      _
    $region9: #{diffusion_forward.1} parent=1 // pred_fallthru
      _
    // Predicated region
    $region10: #{diffusion_forward.1} parent=1 // pred_check
      _
    $region11: #{diffusion_forward.1} parent=1 // pred_check_branch
      %19 = sbr.rel (0) target = $region13
    $region12: #{diffusion_forward.1} parent=1 // pred_region
      _
    $region13: #{diffusion_forward.1} parent=1 // pred_fallthru
      _
    // Predicated region
    $region14: #{diffusion_forward.1} parent=1 // pred_check
      _
    $region15: #{diffusion_forward.1} parent=1 // pred_check_branch
      %21 = sbr.rel (0) target = $region17
    $region16: #{diffusion_forward.1} parent=1 // pred_region
      _
    $region17: #{diffusion_forward.1} parent=1 // pred_fallthru
      _
    // Predicated region
    $region18: #{diffusion_forward.1} parent=1 // pred_check
      _
    $region19: #{diffusion_forward.1} parent=1 // pred_check_branch
      %23 = sbr.rel (0) target = $region21
    $region20: #{diffusion_forward.1} parent=1 // pred_region
      _
    $region21: #{diffusion_forward.1} parent=1 // pred_fallthru
      _
    // Predicated region
    $region22: #{diffusion_forward.1} parent=1 // pred_check
      _
    $region23: #{diffusion_forward.1} parent=1 // pred_check_branch
      %25 = sbr.rel (0) target = $region25
    $region24: #{diffusion_forward.1} parent=1 // pred_region
      _
    $region25: #{diffusion_forward.1} parent=1 // pred_fallthru
      _
    // Predicated region
    $region26: #{diffusion_forward.1} parent=1 // pred_check
      _
    $region27: #{diffusion_forward.1} parent=1 // pred_check_branch
      %27 = sbr.rel (0) target = $region29
    $region28: #{diffusion_forward.1} parent=1 // pred_region
      _
    $region29: #{diffusion_forward.1} parent=1 // pred_fallthru
      _
    // Predicated region
    $region30: #{diffusion_forward.1} parent=1 // pred_check
      _
    $region31: #{diffusion_forward.1} parent=1 // pred_check_branch
      %29 = sbr.rel (0) target = $region33
    $region32: #{diffusion_forward.1} parent=1 // pred_region
      _
    $region33: #{diffusion_forward.1} parent=1 // pred_fallthru
      _
    %v31 = vld [vmem:[%s0] sm:$0xff]
    %v32 = vld [vmem:[%s0 + $0x8] sm:$0xff]
    %v33 = vld [vmem:[%s0 + $0x10] sm:$0xff]
    %v34 = vld [vmem:[%s0 + $0x18] sm:$0xff]
    %v35 = vld [vmem:[%s0 + $0x20] sm:$0xff]
    %v36 = vld [vmem:[%s0 + $0x28] sm:$0xff]
    %v37 = vld [vmem:[%s0 + $0x30] sm:$0x3f]
    %v38 = vld [vmem:[%s3] sm:$0xff]
    %v39 = vld [vmem:[%s3 + $0x8] sm:$0xff]
    %v40 = vld [vmem:[%s3 + $0x10] sm:$0xff]
    %v41 = vld [vmem:[%s3 + $0x18] sm:$0x1]
    %v42 = vld [vmem:[%s4] sm:$0xff]
    %v43 = vld [vmem:[%s4 + $0x8] sm:$0xf]
    %v44 = vld [vmem:[%s4 + $0xc] sm:$0xff]
    %v45 = vld [vmem:[%s4 + $0x14] sm:$0xf]
    %v46 = vld [vmem:[%s4 + $0x18] sm:$0xff]
    %v47 = vld [vmem:[%s4 + $0x20] sm:$0xf]
    %v48 = vld [vmem:[%s4 + $0x24] sm:$0xff]
    %v49 = vld [vmem:[%s4 + $0x2c] sm:$0xf]
    %v50 = vld [vmem:[%s5] sm:$0xff]
    %v51 = vld [vmem:[%s5 + $0x8] sm:$0xf]
    %v52 = vld [vmem:[%s6] sm:$0xff]
    %v53 = vld [vmem:[%s6 + $0x8] sm:$0xff]
    %v54 = vld [vmem:[%s6 + $0x10] sm:$0xff]
    %v55 = vld [vmem:[%s6 + $0x18] sm:$0xff]
    %v56 = vld [vmem:[%s7] sm:$0x3]
    %v57 = vpack.c.bf16 %v32, %v31
    %59 = vset.pattern.permute.xlu0 0
    %60 = vperm.xlu0 %59, %v52
    %v61 = vpop.permute.xlu0 %60
    %vm63 = vcmask 97280
    %v65 = vsel %vm63, %v50, 0
    %vm67 = vcmask 1045504
    %v69 = vsel %vm67, %v57, 0
    %71 = vmatprep.subr.bf16.mxu0 0
    %72 = vmatpush1.bf16.msra.mxu0 0
    %73 = vmatprep.subr.bf16.mxu0 0
    %74 = vmatpush1.bf16.msra.mxu0 0
    %75 = vmatprep.subr.bf16.mxu0 0
    %76 = vmatpush1.bf16.msra.mxu0 0
    %77 = vmatprep.subr.bf16.mxu0 0
    %78 = vmatpush1.bf16.msra.mxu0 0
    %79 = vmatprep.subr.bf16.mxu0 0
    %80 = vmatpush1.bf16.msra.mxu0 0
    %81 = vmatprep.subr.bf16.mxu0 0
    %82 = vmatpush1.bf16.msra.mxu0 0
    %83 = vmatprep.subr.bf16.mxu0 0
    %84 = vmatpush1.bf16.msra.mxu0 0
    %85 = vmatprep.subr.bf16.mxu0 0
    %86 = vmatpush1.bf16.msra.mxu0 %v69
    %87 = vmatprep.subr.bf16.mxu0 0
    %88 = vmatpush2.bf16.msra.mxu0 0
    %89 = vmatprep.subr.bf16.mxu0 0
    %90 = vmatpush2.bf16.msra.mxu0 0
    %91 = vmatprep.subr.bf16.mxu0 0
    %92 = vmatpush2.bf16.msra.mxu0 0
    %93 = vmatprep.subr.bf16.mxu0 0
    %94 = vmatpush2.bf16.msra.mxu0 0
    %95 = vmatprep.subr.bf16.mxu0 0
    %96 = vmatpush2.bf16.msra.mxu0 0
    %97 = vmatprep.subr.bf16.mxu0 0
    %98 = vmatpush2.bf16.msra.mxu0 0
    %99 = vmatprep.subr.bf16.mxu0 0
    %100 = vmatpush2.bf16.msra.mxu0 0
    %101 = vmatprep.subr.bf16.mxu0 0
    %102 = vmatpush2.bf16.msra.mxu0 0
    %103 = vmatprep.mubr.bf16.mxu0 0
    %104 = vmatmul.mubr.bf16.gmra.mxu0 %v65
    %v105 = vpop.f32.mrf.mxu0
    %v106 = vadd.f32 %v61, %v105
    %v107 = vpop.f32.mrf.mxu0
    %v108 = vpop.f32.mrf.mxu0
    %v109 = vpop.f32.mrf.mxu0
    %110 = vdwg.mxu0
    %v111 = vmul.f32 %v106, 0.5
    %v112 = vmul.f32 %v111, 1.442695
    %v113 = vpow.pop %v112
    %v114 = vmul.f32 %v113, %v32
    %v116 = vrot.slane %v114, 4
    %v118 = vadd.f32 %v106, %v116
    %v119 = vmul.f32 %v118, 0.18215
    %v120 = vlaneseq
    %v121 = vshrl.u32 %v120, 7
    %v122 = vsub.s32 4, %v121
    %v123 = vrot.slane %v33, %v122
    %v124 = vmul.f32 %v123, %v119
    %v125 = vlaneseq
    %v126 = vshrl.u32 %v125, 7
    %v127 = vsub.s32 5, %v126
    %v128 = vrot.slane %v33, %v127
    %v129 = vmul.f32 %v128, %v33
    %v130 = vadd.f32 %v124, %v129
    %v131 = vld [vmem:[%s1] sm:$0xff]
    %v132 = vld [vmem:[%s1 + $0x8] sm:$0xff]
    %v133 = vld [vmem:[%s1 + $0x10] sm:$0xff]
    %v134 = vld [vmem:[%s1 + $0x18] sm:$0xff]
    %v135 = vpack.c.bf16 %v132, %v131
    %v136 = vpack.c.bf16 %v134, %v133
    %v137 = vld [vmem:[%s2] sm:$0xff]
    %v138 = vld [vmem:[%s2 + $0x8] sm:$0xff]
    %v139 = vpack.c.bf16 %v138, %v137
    %140 = vset.pattern.permute.xlu0 1
    %141 = vperm.xlu0 %140, %v52
    %v142 = vpop.permute.xlu0 %141
    %145 = vset.pattern.permute.xlu0 1
    %146 = vperm.xlu0 %145, %v53
    %v147 = vpop.permute.xlu0 %146
    %150 = vset.pattern.permute.xlu0 1
    %151 = vperm.xlu0 %150, %v54
    %v152 = vpop.permute.xlu0 %151
    %155 = vset.pattern.permute.xlu0 1
    %156 = vperm.xlu0 %155, %v55
    %v157 = vpop.permute.xlu0 %156
    %v163 = vunpack.c.l.b16 %v42
    %v164 = vunpack.c.l.b16 %v44
    %v165 = vunpack.c.l.b16 %v46
    %v166 = vunpack.c.l.b16 %v48
    %v167 = vpack.c.b16 %v164, %v163
    %v168 = vpack.c.b16 %v166, %v165
    %vm169 = vcmask 261120
    %v171 = vsel %vm169, %v167, 0
    %v174 = vsel %vm169, %v168, 0
    %176 = vmatprep.subr.bf16.mxu0 0
    %177 = vmatpush1.bf16.msra.mxu0 0
    %178 = vmatprep.subr.bf16.mxu0 0
    %179 = vmatpush1.bf16.msra.mxu0 0
    %180 = vmatprep.subr.bf16.mxu0 0
    %181 = vmatpush1.bf16.msra.mxu0 0
    %182 = vmatprep.subr.bf16.mxu0 0
    %183 = vmatpush1.bf16.msra.mxu0 0
    %184 = vmatprep.subr.bf16.mxu0 0
    %185 = vmatpush1.bf16.msra.mxu0 0
    %186 = vmatprep.subr.bf16.mxu0 0
    %187 = vmatpush1.bf16.msra.mxu0 0
    %188 = vmatprep.subr.bf16.mxu0 0
    %189 = vmatpush1.bf16.msra.mxu0 %v136
    %190 = vmatprep.subr.bf16.mxu0 0
    %191 = vmatpush1.bf16.msra.mxu0 %v135
    %192 = vmatprep.subr.bf16.mxu0 0
    %193 = vmatpush2.bf16.msra.mxu0 0
    %194 = vmatprep.subr.bf16.mxu0 0
    %195 = vmatpush2.bf16.msra.mxu0 0
    %196 = vmatprep.subr.bf16.mxu0 0
    %197 = vmatpush2.bf16.msra.mxu0 0
    %198 = vmatprep.subr.bf16.mxu0 0
    %199 = vmatpush2.bf16.msra.mxu0 0
    %200 = vmatprep.subr.bf16.mxu0 0
    %201 = vmatpush2.bf16.msra.mxu0 0
    %202 = vmatprep.subr.bf16.mxu0 0
    %203 = vmatpush2.bf16.msra.mxu0 0
    %204 = vmatprep.subr.bf16.mxu0 0
    %205 = vmatpush2.bf16.msra.mxu0 0
    %206 = vmatprep.subr.bf16.mxu0 0
    %207 = vmatpush2.bf16.msra.mxu0 0
    %208 = vmatprep.mubr.bf16.mxu0 0
    %209 = vmatmul.mubr.bf16.gmra.mxu0 %v171
    %v210 = vpop.f32.mrf.mxu0
    %v211 = vadd.f32 %v142, %v210
    %v212 = vpop.f32.mrf.mxu0
    %v213 = vpop.f32.mrf.mxu0
    %v214 = vadd.f32 %v147, %v213
    %v215 = vpop.f32.mrf.mxu0
    %216 = vmatprep.mubr.bf16.mxu0 0
    %217 = vmatmul.mubr.bf16.gmra.mxu0 %v174
    %v218 = vpop.f32.mrf.mxu0
    %v219 = vadd.f32 %v152, %v218
    %v220 = vpop.f32.mrf.mxu0
    %v221 = vpop.f32.mrf.mxu0
    %v222 = vadd.f32 %v157, %v221
    %v223 = vpop.f32.mrf.mxu0
    %224 = vdwg.mxu0
    %v225 = vlaneseq
    %v226 = vshrl.u32 %v225, 7
    %v227 = vsub.s32 0, %v226
    %v228 = vrot.slane %v56, %v227
    %229 = vrot.lane.b32.xlu0 %v167, 96
    %v230 = vpop.permute.xlu0 %229
    %231 = vrot.lane.b32.xlu0 %v168, 96
    %v232 = vpop.permute.xlu0 %231
    %v236 = vsel %vm169, %v139, 0
    %238 = vmatprep.subr.bf16.mxu0 0
    %239 = vmatpush1.bf16.msra.mxu0 0
    %240 = vmatprep.subr.bf16.mxu0 0
    %241 = vmatpush1.bf16.msra.mxu0 0
    %242 = vmatprep.subr.bf16.mxu0 0
    %243 = vmatpush1.bf16.msra.mxu0 0
    %244 = vmatprep.subr.bf16.mxu0 0
    %245 = vmatpush1.bf16.msra.mxu0 0
    %246 = vmatprep.subr.bf16.mxu0 0
    %247 = vmatpush1.bf16.msra.mxu0 0
    %248 = vmatprep.subr.bf16.mxu0 0
    %249 = vmatpush1.bf16.msra.mxu0 0
    %250 = vmatprep.subr.bf16.mxu0 0
    %251 = vmatpush1.bf16.msra.mxu0 %v232
    %252 = vmatprep.subr.bf16.mxu0 0
    %253 = vmatpush1.bf16.msra.mxu0 %v230
    %254 = vmatprep.subr.bf16.mxu0 0
    %255 = vmatpush2.bf16.msra.mxu0 0
    %256 = vmatprep.subr.bf16.mxu0 0
    %257 = vmatpush2.bf16.msra.mxu0 0
    %258 = vmatprep.subr.bf16.mxu0 0
    %259 = vmatpush2.bf16.msra.mxu0 0
    %260 = vmatprep.subr.bf16.mxu0 0
    %261 = vmatpush2.bf16.msra.mxu0 0
    %262 = vmatprep.subr.bf16.mxu0 0
    %263 = vmatpush2.bf16.msra.mxu0 0
    %264 = vmatprep.subr.bf16.mxu0 0
    %265 = vmatpush2.bf16.msra.mxu0 0
    %266 = vmatprep.subr.bf16.mxu0 0
    %267 = vmatpush2.bf16.msra.mxu0 0
    %268 = vmatprep.subr.bf16.mxu0 0
    %269 = vmatpush2.bf16.msra.mxu0 0
    %270 = vmatprep.mubr.bf16.mxu0 0
    %271 = vmatmul.mubr.bf16.gmra.mxu0 %v236
    %v272 = vpop.f32.mrf.mxu0
    %v273 = vadd.f32 %v228, %v272
    %v274 = vpop.f32.mrf.mxu0
    %v275 = vpop.f32.mrf.mxu0
    %v276 = vadd.f32 %v228, %v275
    %v277 = vpop.f32.mrf.mxu0
    %278 = vdwg.mxu0
    %v279 = vpack.c.bf16 %v34, %v33
    %v280 = vpack.c.bf16 %v36, %v35
    %v281 = vpack.c.bf16 %v37, %v37
    %282 = vset.pattern.permute.xlu0 2
    %283 = vperm.xlu0 %282, %v52
    %v284 = vpop.permute.xlu0 %283
    %286 = vset.pattern.permute.xlu0 2
    %287 = vperm.xlu0 %286, %v53
    %v288 = vpop.permute.xlu0 %287
    %290 = vset.pattern.permute.xlu0 2
    %291 = vperm.xlu0 %290, %v54
    %v292 = vpop.permute.xlu0 %291
    %294 = vset.pattern.permute.xlu0 2
    %295 = vperm.xlu0 %294, %v55
    %v296 = vpop.permute.xlu0 %295
    %298 = vrot.lane.b32.xlu0 %v167, 64
    %v299 = vpop.permute.xlu0 %298
    %300 = vrot.lane.b32.xlu0 %v168, 64
    %v301 = vpop.permute.xlu0 %300
    %vm305 = vcmask 1044480
    %v306 = vrot.slane %v279, 3
    %v307 = vrot.slane %v280, 3
    %v308 = vsel %vm305, %v306, %v307
    %v309 = vrot.slane %v281, 3
    %v310 = vsel %vm305, %v307, %v309
    %v314 = vsel %vm169, %v299, 0
    %v317 = vsel %vm169, %v301, 0
    %319 = vmatprep.subr.bf16.mxu0 0
    %320 = vmatpush1.bf16.msra.mxu0 0
    %321 = vmatprep.subr.bf16.mxu0 0
    %322 = vmatpush1.bf16.msra.mxu0 0
    %323 = vmatprep.subr.bf16.mxu0 0
    %324 = vmatpush1.bf16.msra.mxu0 0
    %325 = vmatprep.subr.bf16.mxu0 0
    %326 = vmatpush1.bf16.msra.mxu0 0
    %327 = vmatprep.subr.bf16.mxu0 0
    %328 = vmatpush1.bf16.msra.mxu0 0
    %329 = vmatprep.subr.bf16.mxu0 0
    %330 = vmatpush1.bf16.msra.mxu0 0
    %331 = vmatprep.subr.bf16.mxu0 0
    %332 = vmatpush1.bf16.msra.mxu0 %v310
    %333 = vmatprep.subr.bf16.mxu0 0
    %334 = vmatpush1.bf16.msra.mxu0 %v308
    %335 = vmatprep.subr.bf16.mxu0 0
    %336 = vmatpush2.bf16.msra.mxu0 0
    %337 = vmatprep.subr.bf16.mxu0 0
    %338 = vmatpush2.bf16.msra.mxu0 0
    %339 = vmatprep.subr.bf16.mxu0 0
    %340 = vmatpush2.bf16.msra.mxu0 0
    %341 = vmatprep.subr.bf16.mxu0 0
    %342 = vmatpush2.bf16.msra.mxu0 0
    %343 = vmatprep.subr.bf16.mxu0 0
    %344 = vmatpush2.bf16.msra.mxu0 0
    %345 = vmatprep.subr.bf16.mxu0 0
    %346 = vmatpush2.bf16.msra.mxu0 0
    %347 = vmatprep.subr.bf16.mxu0 0
    %348 = vmatpush2.bf16.msra.mxu0 0
    %349 = vmatprep.subr.bf16.mxu0 0
    %350 = vmatpush2.bf16.msra.mxu0 0
    %351 = vmatprep.mubr.bf16.mxu0 0
    %352 = vmatmul.mubr.bf16.gmra.mxu0 %v314
    %v353 = vpop.f32.mrf.mxu0
    %v354 = vadd.f32 %v284, %v353
    %v355 = vpop.f32.mrf.mxu0
    %v356 = vpop.f32.mrf.mxu0
    %v357 = vadd.f32 %v288, %v356
    %v358 = vpop.f32.mrf.mxu0
    %359 = vmatprep.mubr.bf16.mxu0 0
    %360 = vmatmul.mubr.bf16.gmra.mxu0 %v317
    %v361 = vpop.f32.mrf.mxu0
    %v362 = vadd.f32 %v292, %v361
    %v363 = vpop.f32.mrf.mxu0
    %v364 = vpop.f32.mrf.mxu0
    %v365 = vadd.f32 %v296, %v364
    %v366 = vpop.f32.mrf.mxu0
    %367 = vdwg.mxu0
    %v368 = vxor.u32 %v354, 2147483648
    %v369 = vxor.u32 %v357, 2147483648
    %v370 = vxor.u32 %v362, 2147483648
    %v371 = vxor.u32 %v365, 2147483648
    %v372 = vmul.f32 %v368, 1.442695
    %v373 = vpow.pop %v372
    %v374 = vmul.f32 %v369, 1.442695
    %v375 = vpow.pop %v374
    %v376 = vmul.f32 %v370, 1.442695
    %v377 = vpow.pop %v376
    %v378 = vmul.f32 %v371, 1.442695
    %v379 = vpow.pop %v378
    %v380 = vadd.f32 %v373, 1.0
    %v381 = vadd.f32 %v375, 1.0
    %v382 = vadd.f32 %v377, 1.0
    %v383 = vadd.f32 %v379, 1.0
    %v384 = vrcp.pop %v380
    %v385 = vmul.f32 1.0, %v384
    %v386 = vrcp.pop %v381
    %v387 = vmul.f32 1.0, %v386
    %v388 = vrcp.pop %v382
    %v389 = vmul.f32 1.0, %v388
    %v390 = vrcp.pop %v383
    %v391 = vmul.f32 1.0, %v390
    %v392 = vmul.f32 %v354, %v385
    %v393 = vmul.f32 %v357, %v387
    %v394 = vmul.f32 %v362, %v389
    %v395 = vmul.f32 %v365, %v391
    %v396 = vpack.c.bf16 %v393, %v392
    %v397 = vpack.c.bf16 %v395, %v394
    %398 = vset.pattern.permute.xlu0 3
    %399 = vperm.xlu0 %398, %v52
    %v400 = vpop.permute.xlu0 %399
    %402 = vset.pattern.permute.xlu0 3
    %403 = vperm.xlu0 %402, %v53
    %v404 = vpop.permute.xlu0 %403
    %406 = vset.pattern.permute.xlu0 3
    %407 = vperm.xlu0 %406, %v54
    %v408 = vpop.permute.xlu0 %407
    %410 = vset.pattern.permute.xlu0 3
    %411 = vperm.xlu0 %410, %v55
    %v412 = vpop.permute.xlu0 %411
    %414 = vrot.lane.b32.xlu0 %v167, 32
    %v415 = vpop.permute.xlu0 %414
    %416 = vrot.lane.b32.xlu0 %v168, 32
    %v417 = vpop.permute.xlu0 %416
    %v419 = vsel %vm169, %v415, 0
    %v422 = vsel %vm169, %v417, 0
    %424 = vmatprep.subr.bf16.mxu0 0
    %425 = vmatpush1.bf16.msra.mxu0 0
    %426 = vmatprep.subr.bf16.mxu0 0
    %427 = vmatpush1.bf16.msra.mxu0 0
    %428 = vmatprep.subr.bf16.mxu0 0
    %429 = vmatpush1.bf16.msra.mxu0 0
    %430 = vmatprep.subr.bf16.mxu0 0
    %431 = vmatpush1.bf16.msra.mxu0 0
    %432 = vmatprep.subr.bf16.mxu0 0
    %433 = vmatpush1.bf16.msra.mxu0 0
    %434 = vmatprep.subr.bf16.mxu0 0
    %435 = vmatpush1.bf16.msra.mxu0 0
    %436 = vmatprep.subr.bf16.mxu0 0
    %437 = vmatpush1.bf16.msra.mxu0 %v397
    %438 = vmatprep.subr.bf16.mxu0 0
    %439 = vmatpush1.bf16.msra.mxu0 %v396
    %440 = vmatprep.subr.bf16.mxu0 0
    %441 = vmatpush2.bf16.msra.mxu0 0
    %442 = vmatprep.subr.bf16.mxu0 0
    %443 = vmatpush2.bf16.msra.mxu0 0
    %444 = vmatprep.subr.bf16.mxu0 0
    %445 = vmatpush2.bf16.msra.mxu0 0
    %446 = vmatprep.subr.bf16.mxu0 0
    %447 = vmatpush2.bf16.msra.mxu0 0
    %448 = vmatprep.subr.bf16.mxu0 0
    %449 = vmatpush2.bf16.msra.mxu0 0
    %450 = vmatprep.subr.bf16.mxu0 0
    %451 = vmatpush2.bf16.msra.mxu0 0
    %452 = vmatprep.subr.bf16.mxu0 0
    %453 = vmatpush2.bf16.msra.mxu0 0
    %454 = vmatprep.subr.bf16.mxu0 0
    %455 = vmatpush2.bf16.msra.mxu0 0
    %456 = vmatprep.mubr.bf16.mxu0 0
    %457 = vmatmul.mubr.bf16.gmra.mxu0 %v419
    %v458 = vpop.f32.mrf.mxu0
    %v459 = vadd.f32 %v400, %v458
    %v460 = vpop.f32.mrf.mxu0
    %v461 = vpop.f32.mrf.mxu0
    %v462 = vadd.f32 %v404, %v461
    %v463 = vpop.f32.mrf.mxu0
    %464 = vmatprep.mubr.bf16.mxu0 0
    %465 = vmatmul.mubr.bf16.gmra.mxu0 %v422
    %v466 = vpop.f32.mrf.mxu0
    %v467 = vadd.f32 %v408, %v466
    %v468 = vpop.f32.mrf.mxu0
    %v469 = vpop.f32.mrf.mxu0
    %v470 = vadd.f32 %v412, %v469
    %v471 = vpop.f32.mrf.mxu0
    %472 = vdwg.mxu0
    %473 = vrot.lane.b32.xlu0 %v130, 9
    %v474 = vpop.permute.xlu0 %473
    %v475 = vlaneseq
    %v476 = vshrl.u32 %v475, 7
    %v477 = vsub.s32 0, %v476
    %v478 = vrot.slane %v38, %v477
    %v479 = vmul.f32 %v474, %v478
    %480 = vrot.lane.b32.xlu0 %v130, 8
    %v481 = vpop.permute.xlu0 %480
    %v482 = vlaneseq
    %v483 = vshrl.u32 %v482, 7
    %v484 = vsub.s32 1, %v483
    %v485 = vrot.slane %v38, %v484
    %v486 = vmul.f32 %v481, %v485
    %487 = vrot.lane.b32.xlu0 %v130, 7
    %v488 = vpop.permute.xlu0 %487
    %v489 = vlaneseq
    %v490 = vshrl.u32 %v489, 7
    %v491 = vsub.s32 2, %v490
    %v492 = vrot.slane %v38, %v491
    %v493 = vmul.f32 %v488, %v492
    %494 = vrot.lane.b32.xlu0 %v130, 1
    %v495 = vpop.permute.xlu0 %494
    %v496 = vlaneseq
    %v497 = vshrl.u32 %v496, 7
    %v498 = vsub.s32 3, %v497
    %v499 = vrot.slane %v38, %v498
    %v500 = vmul.f32 %v495, %v499
    %501 = vrot.lane.b32.xlu0 %v130, 127
    %v502 = vpop.permute.xlu0 %501
    %v503 = vlaneseq
    %v504 = vshrl.u32 %v503, 7
    %v505 = vsub.s32 5, %v504
    %v506 = vrot.slane %v38, %v505
    %v507 = vmul.f32 %v502, %v506
    %508 = vrot.lane.b32.xlu0 %v130, 121
    %v509 = vpop.permute.xlu0 %508
    %v510 = vlaneseq
    %v511 = vshrl.u32 %v510, 7
    %v512 = vsub.s32 6, %v511
    %v513 = vrot.slane %v38, %v512
    %v514 = vmul.f32 %v509, %v513
    %515 = vrot.lane.b32.xlu0 %v130, 120
    %v516 = vpop.permute.xlu0 %515
    %v517 = vlaneseq
    %v518 = vshrl.u32 %v517, 7
    %v519 = vsub.s32 7, %v518
    %v520 = vrot.slane %v38, %v519
    %v521 = vmul.f32 %v516, %v520
    %522 = vrot.lane.b32.xlu0 %v130, 119
    %v523 = vpop.permute.xlu0 %522
    %v524 = vlaneseq
    %v525 = vshrl.u32 %v524, 7
    %v526 = vsub.s32 0, %v525
    %v527 = vrot.slane %v39, %v526
    %v528 = vmul.f32 %v523, %v527
    %v530 = vrot.slane %v486, 4
    %v533 = vrot.slane %v500, 4
    %v536 = vrot.slane %v507, 4
    %v539 = vrot.slane %v521, 4
    %vm541 = vcmask 1043456
    %v542 = vsel %vm541, %v479, %v530
    %v543 = vsel %vm541, %v493, %v533
    %v544 = vsel %vm541, %v130, %v536
    %v545 = vsel %vm541, %v514, %v539
    %v546 = vpack.c.bf16 %v543, %v542
    %v547 = vpack.c.bf16 %v545, %v544
    %v548 = vpack.c.bf16 %v528, %v528
    %549 = vset.pattern.permute.xlu0 4
    %550 = vperm.xlu0 %549, %v52
    %v551 = vpop.permute.xlu0 %550
    %553 = vset.pattern.permute.xlu0 4
    %554 = vperm.xlu0 %553, %v53
    %v555 = vpop.permute.xlu0 %554
    %557 = vset.pattern.permute.xlu0 4
    %558 = vperm.xlu0 %557, %v54
    %v559 = vpop.permute.xlu0 %558
    %561 = vset.pattern.permute.xlu0 4
    %562 = vperm.xlu0 %561, %v55
    %v563 = vpop.permute.xlu0 %562
    %v565 = vunpack.c.h.b16 %v42
    %v566 = vunpack.c.h.b16 %v44
    %v567 = vunpack.c.h.b16 %v46
    %v568 = vunpack.c.h.b16 %v48
    %v569 = vpack.c.b16 %v566, %v565
    %v570 = vpack.c.b16 %v568, %v567
    %vm571 = vcmask 293888
    %v573 = vsel %vm571, %v569, 0
    %v576 = vsel %vm571, %v570, 0
    %vm578 = vcmask 1041408
    %v580 = vsel %vm578, %v548, 0
    %582 = vmatprep.subr.bf16.mxu0 0
    %583 = vmatpush1.bf16.msra.mxu0 0
    %584 = vmatprep.subr.bf16.mxu0 0
    %585 = vmatpush1.bf16.msra.mxu0 0
    %586 = vmatprep.subr.bf16.mxu0 0
    %587 = vmatpush1.bf16.msra.mxu0 0
    %588 = vmatprep.subr.bf16.mxu0 0
    %589 = vmatpush1.bf16.msra.mxu0 0
    %590 = vmatprep.subr.bf16.mxu0 0
    %591 = vmatpush1.bf16.msra.mxu0 0
    %592 = vmatprep.subr.bf16.mxu0 0
    %593 = vmatpush1.bf16.msra.mxu0 %v580
    %594 = vmatprep.subr.bf16.mxu0 0
    %595 = vmatpush1.bf16.msra.mxu0 %v547
    %596 = vmatprep.subr.bf16.mxu0 0
    %597 = vmatpush1.bf16.msra.mxu0 %v546
    %598 = vmatprep.subr.bf16.mxu0 0
    %599 = vmatpush2.bf16.msra.mxu0 0
    %600 = vmatprep.subr.bf16.mxu0 0
    %601 = vmatpush2.bf16.msra.mxu0 0
    %602 = vmatprep.subr.bf16.mxu0 0
    %603 = vmatpush2.bf16.msra.mxu0 0
    %604 = vmatprep.subr.bf16.mxu0 0
    %605 = vmatpush2.bf16.msra.mxu0 0
    %606 = vmatprep.subr.bf16.mxu0 0
    %607 = vmatpush2.bf16.msra.mxu0 0
    %608 = vmatprep.subr.bf16.mxu0 0
    %609 = vmatpush2.bf16.msra.mxu0 0
    %610 = vmatprep.subr.bf16.mxu0 0
    %611 = vmatpush2.bf16.msra.mxu0 0
    %612 = vmatprep.subr.bf16.mxu0 0
    %613 = vmatpush2.bf16.msra.mxu0 0
    %614 = vmatprep.mubr.bf16.mxu0 0
    %615 = vmatmul.mubr.bf16.gmra.mxu0 %v573
    %v616 = vpop.f32.mrf.mxu0
    %v617 = vadd.f32 %v551, %v616
    %v618 = vpop.f32.mrf.mxu0
    %v619 = vpop.f32.mrf.mxu0
    %v620 = vadd.f32 %v555, %v619
    %v621 = vpop.f32.mrf.mxu0
    %622 = vmatprep.mubr.bf16.mxu0 0
    %623 = vmatmul.mubr.bf16.gmra.mxu0 %v576
    %v624 = vpop.f32.mrf.mxu0
    %v625 = vadd.f32 %v559, %v624
    %v626 = vpop.f32.mrf.mxu0
    %v627 = vpop.f32.mrf.mxu0
    %v628 = vadd.f32 %v563, %v627
    %v629 = vpop.f32.mrf.mxu0
    %630 = vdwg.mxu0
    %v631 = vadd.f32 %v617, %v459
    %v632 = vadd.f32 %v620, %v462
    %v633 = vadd.f32 %v625, %v467
    %v634 = vadd.f32 %v628, %v470
    %v635 = vxor.u32 %v631, 2147483648
    %v636 = vxor.u32 %v632, 2147483648
    %v637 = vxor.u32 %v633, 2147483648
    %v638 = vxor.u32 %v634, 2147483648
    %v639 = vmul.f32 %v635, 1.442695
    %v640 = vpow.pop %v639
    %v641 = vmul.f32 %v636, 1.442695
    %v642 = vpow.pop %v641
    %v643 = vmul.f32 %v637, 1.442695
    %v644 = vpow.pop %v643
    %v645 = vmul.f32 %v638, 1.442695
    %v646 = vpow.pop %v645
    %v647 = vadd.f32 %v640, 1.0
    %v648 = vadd.f32 %v642, 1.0
    %v649 = vadd.f32 %v644, 1.0
    %v650 = vadd.f32 %v646, 1.0
    %v651 = vrcp.pop %v647
    %v652 = vmul.f32 1.0, %v651
    %v653 = vrcp.pop %v648
    %v654 = vmul.f32 1.0, %v653
    %v655 = vrcp.pop %v649
    %v656 = vmul.f32 1.0, %v655
    %v657 = vrcp.pop %v650
    %v658 = vmul.f32 1.0, %v657
    %v659 = vmul.f32 %v631, %v652
    %v660 = vmul.f32 %v632, %v654
    %v661 = vmul.f32 %v633, %v656
    %v662 = vmul.f32 %v634, %v658
    %v663 = vpack.c.bf16 %v660, %v659
    %v664 = vpack.c.bf16 %v662, %v661
    %665 = vset.pattern.permute.xlu0 5
    %666 = vperm.xlu0 %665, %v52
    %v667 = vpop.permute.xlu0 %666
    %669 = vset.pattern.permute.xlu0 5
    %670 = vperm.xlu0 %669, %v53
    %v671 = vpop.permute.xlu0 %670
    %673 = vset.pattern.permute.xlu0 5
    %674 = vperm.xlu0 %673, %v54
    %v675 = vpop.permute.xlu0 %674
    %677 = vset.pattern.permute.xlu0 5
    %678 = vperm.xlu0 %677, %v55
    %v679 = vpop.permute.xlu0 %678
    %681 = vrot.lane.b32.xlu0 %v569, 92
    %v682 = vpop.permute.xlu0 %681
    %683 = vrot.lane.b32.xlu0 %v570, 92
    %v684 = vpop.permute.xlu0 %683
    %v686 = vsel %vm169, %v682, 0
    %v689 = vsel %vm169, %v684, 0
    %691 = vmatprep.subr.bf16.mxu0 0
    %692 = vmatpush1.bf16.msra.mxu0 0
    %693 = vmatprep.subr.bf16.mxu0 0
    %694 = vmatpush1.bf16.msra.mxu0 0
    %695 = vmatprep.subr.bf16.mxu0 0
    %696 = vmatpush1.bf16.msra.mxu0 0
    %697 = vmatprep.subr.bf16.mxu0 0
    %698 = vmatpush1.bf16.msra.mxu0 0
    %699 = vmatprep.subr.bf16.mxu0 0
    %700 = vmatpush1.bf16.msra.mxu0 0
    %701 = vmatprep.subr.bf16.mxu0 0
    %702 = vmatpush1.bf16.msra.mxu0 0
    %703 = vmatprep.subr.bf16.mxu0 0
    %704 = vmatpush1.bf16.msra.mxu0 %v664
    %705 = vmatprep.subr.bf16.mxu0 0
    %706 = vmatpush1.bf16.msra.mxu0 %v663
    %707 = vmatprep.subr.bf16.mxu0 0
    %708 = vmatpush2.bf16.msra.mxu0 0
    %709 = vmatprep.subr.bf16.mxu0 0
    %710 = vmatpush2.bf16.msra.mxu0 0
    %711 = vmatprep.subr.bf16.mxu0 0
    %712 = vmatpush2.bf16.msra.mxu0 0
    %713 = vmatprep.subr.bf16.mxu0 0
    %714 = vmatpush2.bf16.msra.mxu0 0
    %715 = vmatprep.subr.bf16.mxu0 0
    %716 = vmatpush2.bf16.msra.mxu0 0
    %717 = vmatprep.subr.bf16.mxu0 0
    %718 = vmatpush2.bf16.msra.mxu0 0
    %719 = vmatprep.subr.bf16.mxu0 0
    %720 = vmatpush2.bf16.msra.mxu0 0
    %721 = vmatprep.subr.bf16.mxu0 0
    %722 = vmatpush2.bf16.msra.mxu0 0
    %723 = vmatprep.mubr.bf16.mxu0 0
    %724 = vmatmul.mubr.bf16.gmra.mxu0 %v686
    %v725 = vpop.f32.mrf.mxu0
    %v726 = vadd.f32 %v667, %v725
    %v727 = vpop.f32.mrf.mxu0
    %v728 = vpop.f32.mrf.mxu0
    %v729 = vadd.f32 %v671, %v728
    %v730 = vpop.f32.mrf.mxu0
    %731 = vmatprep.mubr.bf16.mxu0 0
    %732 = vmatmul.mubr.bf16.gmra.mxu0 %v689
    %v733 = vpop.f32.mrf.mxu0
    %v734 = vadd.f32 %v675, %v733
    %v735 = vpop.f32.mrf.mxu0
    %v736 = vpop.f32.mrf.mxu0
    %v737 = vadd.f32 %v679, %v736
    %v738 = vpop.f32.mrf.mxu0
    %739 = vdwg.mxu0
    %v740 = vpack.c.bf16 %v276, %v273
    %v741 = vlaneseq
    %v742 = vshrl.u32 %v741, 7
    %v743 = vsub.s32 1, %v742
    %v744 = vrot.slane %v56, %v743
    %745 = vrot.lane.b32.xlu0 %v569, 60
    %v746 = vpop.permute.xlu0 %745
    %747 = vrot.lane.b32.xlu0 %v570, 60
    %v748 = vpop.permute.xlu0 %747
    %v752 = vsel %vm169, %v740, 0
    %754 = vmatprep.subr.bf16.mxu0 0
    %755 = vmatpush1.bf16.msra.mxu0 0
    %756 = vmatprep.subr.bf16.mxu0 0
    %757 = vmatpush1.bf16.msra.mxu0 0
    %758 = vmatprep.subr.bf16.mxu0 0
    %759 = vmatpush1.bf16.msra.mxu0 0
    %760 = vmatprep.subr.bf16.mxu0 0
    %761 = vmatpush1.bf16.msra.mxu0 0
    %762 = vmatprep.subr.bf16.mxu0 0
    %763 = vmatpush1.bf16.msra.mxu0 0
    %764 = vmatprep.subr.bf16.mxu0 0
    %765 = vmatpush1.bf16.msra.mxu0 0
    %766 = vmatprep.subr.bf16.mxu0 0
    %767 = vmatpush1.bf16.msra.mxu0 %v748
    %768 = vmatprep.subr.bf16.mxu0 0
    %769 = vmatpush1.bf16.msra.mxu0 %v746
    %770 = vmatprep.subr.bf16.mxu0 0
    %771 = vmatpush2.bf16.msra.mxu0 0
    %772 = vmatprep.subr.bf16.mxu0 0
    %773 = vmatpush2.bf16.msra.mxu0 0
    %774 = vmatprep.subr.bf16.mxu0 0
    %775 = vmatpush2.bf16.msra.mxu0 0
    %776 = vmatprep.subr.bf16.mxu0 0
    %777 = vmatpush2.bf16.msra.mxu0 0
    %778 = vmatprep.subr.bf16.mxu0 0
    %779 = vmatpush2.bf16.msra.mxu0 0
    %780 = vmatprep.subr.bf16.mxu0 0
    %781 = vmatpush2.bf16.msra.mxu0 0
    %782 = vmatprep.subr.bf16.mxu0 0
    %783 = vmatpush2.bf16.msra.mxu0 0
    %784 = vmatprep.subr.bf16.mxu0 0
    %785 = vmatpush2.bf16.msra.mxu0 0
    %786 = vmatprep.mubr.bf16.mxu0 0
    %787 = vmatmul.mubr.bf16.gmra.mxu0 %v752
    %v788 = vpop.f32.mrf.mxu0
    %v789 = vadd.f32 %v744, %v788
    %v790 = vpop.f32.mrf.mxu0
    %v791 = vpop.f32.mrf.mxu0
    %v792 = vadd.f32 %v744, %v791
    %v793 = vpop.f32.mrf.mxu0
    %794 = vdwg.mxu0
    %v795 = vpack.c.bf16 %v214, %v211
    %v796 = vpack.c.bf16 %v222, %v219
    %797 = vset.pattern.permute.xlu0 6
    %798 = vperm.xlu0 %797, %v52
    %v799 = vpop.permute.xlu0 %798
    %801 = vset.pattern.permute.xlu0 6
    %802 = vperm.xlu0 %801, %v53
    %v803 = vpop.permute.xlu0 %802
    %805 = vset.pattern.permute.xlu0 6
    %806 = vperm.xlu0 %805, %v54
    %v807 = vpop.permute.xlu0 %806
    %809 = vset.pattern.permute.xlu0 6
    %810 = vperm.xlu0 %809, %v55
    %v811 = vpop.permute.xlu0 %810
    %v817 = vunpack.c.l.b16 %v43
    %v818 = vunpack.c.l.b16 %v45
    %v819 = vunpack.c.l.b16 %v47
    %v820 = vunpack.c.l.b16 %v49
    %v821 = vpack.c.b16 %v818, %v817
    %v822 = vpack.c.b16 %v820, %v819
    %823 = vrot.lane.b32.xlu0 %v569, 28
    %v824 = vpop.permute.xlu0 %823
    %825 = vrot.lane.b32.xlu0 %v821, 28
    %v826 = vpop.permute.xlu0 %825
    %827 = vrot.lane.b32.xlu0 %v570, 28
    %v828 = vpop.permute.xlu0 %827
    %829 = vrot.lane.b32.xlu0 %v822, 28
    %v830 = vpop.permute.xlu0 %829
    %vm831 = vcmask 228352
    %v832 = vsel %vm831, %v824, %v826
    %v833 = vsel %vm831, %v828, %v830
    %v835 = vsel %vm169, %v832, 0
    %v838 = vsel %vm169, %v833, 0
    %840 = vmatprep.subr.bf16.mxu0 0
    %841 = vmatpush1.bf16.msra.mxu0 0
    %842 = vmatprep.subr.bf16.mxu0 0
    %843 = vmatpush1.bf16.msra.mxu0 0
    %844 = vmatprep.subr.bf16.mxu0 0
    %845 = vmatpush1.bf16.msra.mxu0 0
    %846 = vmatprep.subr.bf16.mxu0 0
    %847 = vmatpush1.bf16.msra.mxu0 0
    %848 = vmatprep.subr.bf16.mxu0 0
    %849 = vmatpush1.bf16.msra.mxu0 0
    %850 = vmatprep.subr.bf16.mxu0 0
    %851 = vmatpush1.bf16.msra.mxu0 0
    %852 = vmatprep.subr.bf16.mxu0 0
    %853 = vmatpush1.bf16.msra.mxu0 %v796
    %854 = vmatprep.subr.bf16.mxu0 0
    %855 = vmatpush1.bf16.msra.mxu0 %v795
    %856 = vmatprep.subr.bf16.mxu0 0
    %857 = vmatpush2.bf16.msra.mxu0 0
    %858 = vmatprep.subr.bf16.mxu0 0
    %859 = vmatpush2.bf16.msra.mxu0 0
    %860 = vmatprep.subr.bf16.mxu0 0
    %861 = vmatpush2.bf16.msra.mxu0 0
    %862 = vmatprep.subr.bf16.mxu0 0
    %863 = vmatpush2.bf16.msra.mxu0 0
    %864 = vmatprep.subr.bf16.mxu0 0
    %865 = vmatpush2.bf16.msra.mxu0 0
    %866 = vmatprep.subr.bf16.mxu0 0
    %867 = vmatpush2.bf16.msra.mxu0 0
    %868 = vmatprep.subr.bf16.mxu0 0
    %869 = vmatpush2.bf16.msra.mxu0 0
    %870 = vmatprep.subr.bf16.mxu0 0
    %871 = vmatpush2.bf16.msra.mxu0 0
    %872 = vmatprep.mubr.bf16.mxu0 0
    %873 = vmatmul.mubr.bf16.gmra.mxu0 %v835
    %v874 = vpop.f32.mrf.mxu0
    %v875 = vadd.f32 %v799, %v874
    %v876 = vpop.f32.mrf.mxu0
    %v877 = vpop.f32.mrf.mxu0
    %v878 = vadd.f32 %v803, %v877
    %v879 = vpop.f32.mrf.mxu0
    %880 = vmatprep.mubr.bf16.mxu0 0
    %881 = vmatmul.mubr.bf16.gmra.mxu0 %v838
    %v882 = vpop.f32.mrf.mxu0
    %v883 = vadd.f32 %v807, %v882
    %v884 = vpop.f32.mrf.mxu0
    %v885 = vpop.f32.mrf.mxu0
    %v886 = vadd.f32 %v811, %v885
    %v887 = vpop.f32.mrf.mxu0
    %888 = vdwg.mxu0
    %v889 = vpack.c.bf16 %v792, %v789
    %v890 = vpack.c.bf16 %v729, %v726
    %v891 = vpack.c.bf16 %v737, %v734
    %vm895 = vcmask 1046528
    %v896 = vrot.slane %v39, 1
    %v897 = vrot.slane %v40, 1
    %v898 = vsel %vm895, %v896, %v897
    %v899 = vrot.slane %v41, 1
    %v900 = vsel %vm895, %v897, %v899
    %v904 = vsel %vm169, %v889, 0
    %906 = vmatprep.subr.bf16.mxu0 0
    %907 = vmatpush1.bf16.msra.mxu0 0
    %908 = vmatprep.subr.bf16.mxu0 0
    %909 = vmatpush1.bf16.msra.mxu0 0
    %910 = vmatprep.subr.bf16.mxu0 0
    %911 = vmatpush1.bf16.msra.mxu0 0
    %912 = vmatprep.subr.bf16.mxu0 0
    %913 = vmatpush1.bf16.msra.mxu0 0
    %914 = vmatprep.subr.bf16.mxu0 0
    %915 = vmatpush1.bf16.msra.mxu0 0
    %916 = vmatprep.subr.bf16.mxu0 0
    %917 = vmatpush1.bf16.msra.mxu0 0
    %918 = vmatprep.subr.bf16.mxu0 0
    %919 = vmatpush1.bf16.msra.mxu0 %v891
    %920 = vmatprep.subr.bf16.mxu0 0
    %921 = vmatpush1.bf16.msra.mxu0 %v890
    %922 = vmatprep.subr.bf16.mxu0 0
    %923 = vmatpush2.bf16.msra.mxu0 0
    %924 = vmatprep.subr.bf16.mxu0 0
    %925 = vmatpush2.bf16.msra.mxu0 0
    %926 = vmatprep.subr.bf16.mxu0 0
    %927 = vmatpush2.bf16.msra.mxu0 0
    %928 = vmatprep.subr.bf16.mxu0 0
    %929 = vmatpush2.bf16.msra.mxu0 0
    %930 = vmatprep.subr.bf16.mxu0 0
    %931 = vmatpush2.bf16.msra.mxu0 0
    %932 = vmatprep.subr.bf16.mxu0 0
    %933 = vmatpush2.bf16.msra.mxu0 0
    %934 = vmatprep.subr.bf16.mxu0 0
    %935 = vmatpush2.bf16.msra.mxu0 0
    %936 = vmatprep.subr.bf16.mxu0 0
    %937 = vmatpush2.bf16.msra.mxu0 0
    %938 = vmatprep.mubr.bf16.mxu0 0
    %939 = vmatmul.mubr.bf16.gmra.mxu0 %v904
    %v940 = vpop.f32.mrf.mxu0
    %v941 = vadd.f32 %v898, %v940
    %v942 = vpop.f32.mrf.mxu0
    %v943 = vpop.f32.mrf.mxu0
    %v944 = vadd.f32 %v900, %v943
    %v945 = vpop.f32.mrf.mxu0
    %946 = vdwg.mxu0
    %v947 = vmax.f32 %v941, %v944
    %v948 = vrot.slane %v947, 4
    %v949 = vmax.f32 %v947, %v948
    %v950 = vrot.slane %v949, 2
    %v951 = vmax.f32 %v949, %v950
    %v952 = vrot.slane %v951, 1
    %v953 = vmax.f32 %v951, %v952
    %v954 = vsub.f32 %v941, %v953
    %v955 = vsub.f32 %v944, %v953
    %v956 = vmul.f32 %v954, 1.442695
    %v957 = vpow.pop %v956
    %v958 = vmul.f32 %v955, 1.442695
    %v959 = vpow.pop %v958
    %v960 = vadd.f32 %v957, %v959
    %v961 = vrot.slane %v960, 4
    %v962 = vadd.f32 %v960, %v961
    %v963 = vrot.slane %v962, 2
    %v964 = vadd.f32 %v962, %v963
    %v965 = vrot.slane %v964, 1
    %v966 = vadd.f32 %v964, %v965
    %v967 = vrcp.pop %v966
    %v968 = vmul.f32 %v957, %v967
    %v969 = vmul.f32 %v959, %v967
    %v970 = vpack.c.bf16 %v878, %v875
    %v971 = vpack.c.bf16 %v886, %v883
    %v972 = vpack.c.bf16 %v969, %v968
    %vm973 = vcmask 130048
    %v975 = vsel %vm973, %v970, 0
    %v978 = vsel %vm973, %v971, 0
    %980 = vmatprep.subr.bf16.mxu0 0
    %981 = vmatpush1.bf16.msra.mxu0 0
    %982 = vmatprep.subr.bf16.mxu0 0
    %983 = vmatpush1.bf16.msra.mxu0 0
    %984 = vmatprep.subr.bf16.mxu0 0
    %985 = vmatpush1.bf16.msra.mxu0 0
    %986 = vmatprep.subr.bf16.mxu0 0
    %987 = vmatpush1.bf16.msra.mxu0 0
    %988 = vmatprep.subr.bf16.mxu0 0
    %989 = vmatpush1.bf16.msra.mxu0 0
    %990 = vmatprep.subr.bf16.mxu0 0
    %991 = vmatpush1.bf16.msra.mxu0 0
    %992 = vmatprep.subr.bf16.mxu0 0
    %993 = vmatpush1.bf16.msra.mxu0 0
    %994 = vmatprep.subr.bf16.mxu0 0
    %995 = vmatpush1.bf16.msra.mxu0 %v972
    %996 = vmatprep.subr.bf16.mxu0 0
    %997 = vmatpush2.bf16.msra.mxu0 0
    %998 = vmatprep.subr.bf16.mxu0 0
    %999 = vmatpush2.bf16.msra.mxu0 0
    %1000 = vmatprep.subr.bf16.mxu0 0
    %1001 = vmatpush2.bf16.msra.mxu0 0
    %1002 = vmatprep.subr.bf16.mxu0 0
    %1003 = vmatpush2.bf16.msra.mxu0 0
    %1004 = vmatprep.subr.bf16.mxu0 0
    %1005 = vmatpush2.bf16.msra.mxu0 0
    %1006 = vmatprep.subr.bf16.mxu0 0
    %1007 = vmatpush2.bf16.msra.mxu0 0
    %1008 = vmatprep.subr.bf16.mxu0 0
    %1009 = vmatpush2.bf16.msra.mxu0 0
    %1010 = vmatprep.subr.bf16.mxu0 0
    %1011 = vmatpush2.bf16.msra.mxu0 0
    %1012 = vmatprep.mubr.bf16.mxu0 0
    %1013 = vmatmul.mubr.bf16.gmra.mxu0 %v975
    %v1014 = vpop.f32.mrf.mxu0
    %v1015 = vadd.f32 0.0, %v1014
    %v1016 = vpop.f32.mrf.mxu0
    %v1017 = vpop.f32.mrf.mxu0
    %v1018 = vadd.f32 0.0, %v1017
    %v1019 = vpop.f32.mrf.mxu0
    %1020 = vmatprep.mubr.bf16.mxu0 0
    %1021 = vmatmul.mubr.bf16.gmra.mxu0 %v978
    %v1022 = vpop.f32.mrf.mxu0
    %v1023 = vadd.f32 0.0, %v1022
    %v1024 = vpop.f32.mrf.mxu0
    %v1025 = vpop.f32.mrf.mxu0
    %v1026 = vadd.f32 0.0, %v1025
    %v1027 = vpop.f32.mrf.mxu0
    %1028 = vdwg.mxu0
    %v1029 = vpack.c.bf16 %v1018, %v1015
    %v1030 = vpack.c.bf16 %v1026, %v1023
    %1031 = vset.pattern.permute.xlu0 7
    %1032 = vperm.xlu0 %1031, %v52
    %v1033 = vpop.permute.xlu0 %1032
    %1035 = vset.pattern.permute.xlu0 7
    %1036 = vperm.xlu0 %1035, %v53
    %v1037 = vpop.permute.xlu0 %1036
    %1039 = vset.pattern.permute.xlu0 7
    %1040 = vperm.xlu0 %1039, %v54
    %v1041 = vpop.permute.xlu0 %1040
    %1043 = vset.pattern.permute.xlu0 7
    %1044 = vperm.xlu0 %1043, %v55
    %v1045 = vpop.permute.xlu0 %1044
    %1047 = vrot.lane.b32.xlu0 %v821, 124
    %v1048 = vpop.permute.xlu0 %1047
    %1049 = vrot.lane.b32.xlu0 %v822, 124
    %v1050 = vpop.permute.xlu0 %1049
    %v1052 = vsel %vm169, %v1048, 0
    %v1055 = vsel %vm169, %v1050, 0
    %1057 = vmatprep.subr.bf16.mxu0 0
    %1058 = vmatpush1.bf16.msra.mxu0 0
    %1059 = vmatprep.subr.bf16.mxu0 0
    %1060 = vmatpush1.bf16.msra.mxu0 0
    %1061 = vmatprep.subr.bf16.mxu0 0
    %1062 = vmatpush1.bf16.msra.mxu0 0
    %1063 = vmatprep.subr.bf16.mxu0 0
    %1064 = vmatpush1.bf16.msra.mxu0 0
    %1065 = vmatprep.subr.bf16.mxu0 0
    %1066 = vmatpush1.bf16.msra.mxu0 0
    %1067 = vmatprep.subr.bf16.mxu0 0
    %1068 = vmatpush1.bf16.msra.mxu0 0
    %1069 = vmatprep.subr.bf16.mxu0 0
    %1070 = vmatpush1.bf16.msra.mxu0 %v1030
    %1071 = vmatprep.subr.bf16.mxu0 0
    %1072 = vmatpush1.bf16.msra.mxu0 %v1029
    %1073 = vmatprep.subr.bf16.mxu0 0
    %1074 = vmatpush2.bf16.msra.mxu0 0
    %1075 = vmatprep.subr.bf16.mxu0 0
    %1076 = vmatpush2.bf16.msra.mxu0 0
    %1077 = vmatprep.subr.bf16.mxu0 0
    %1078 = vmatpush2.bf16.msra.mxu0 0
    %1079 = vmatprep.subr.bf16.mxu0 0
    %1080 = vmatpush2.bf16.msra.mxu0 0
    %1081 = vmatprep.subr.bf16.mxu0 0
    %1082 = vmatpush2.bf16.msra.mxu0 0
    %1083 = vmatprep.subr.bf16.mxu0 0
    %1084 = vmatpush2.bf16.msra.mxu0 0
    %1085 = vmatprep.subr.bf16.mxu0 0
    %1086 = vmatpush2.bf16.msra.mxu0 0
    %1087 = vmatprep.subr.bf16.mxu0 0
    %1088 = vmatpush2.bf16.msra.mxu0 0
    %1089 = vmatprep.mubr.bf16.mxu0 0
    %1090 = vmatmul.mubr.bf16.gmra.mxu0 %v1052
    %v1091 = vpop.f32.mrf.mxu0
    %v1092 = vadd.f32 %v1033, %v1091
    %v1093 = vpop.f32.mrf.mxu0
    %v1094 = vpop.f32.mrf.mxu0
    %v1095 = vadd.f32 %v1037, %v1094
    %v1096 = vpop.f32.mrf.mxu0
    %1097 = vmatprep.mubr.bf16.mxu0 0
    %1098 = vmatmul.mubr.bf16.gmra.mxu0 %v1055
    %v1099 = vpop.f32.mrf.mxu0
    %v1100 = vadd.f32 %v1041, %v1099
    %v1101 = vpop.f32.mrf.mxu0
    %v1102 = vpop.f32.mrf.mxu0
    %v1103 = vadd.f32 %v1045, %v1102
    %v1104 = vpop.f32.mrf.mxu0
    %1105 = vdwg.mxu0
    %v1106 = vadd.f32 %v659, %v1092
    %v1107 = vadd.f32 %v660, %v1095
    %v1108 = vadd.f32 %v661, %v1100
    %v1109 = vadd.f32 %v662, %v1103
    %1110 = vrot.lane.b32.xlu0 %v1106, 9
    %v1111 = vpop.permute.xlu0 %1110
    %1112 = vrot.lane.b32.xlu0 %v1107, 9
    %v1113 = vpop.permute.xlu0 %1112
    %1114 = vrot.lane.b32.xlu0 %v1108, 9
    %v1115 = vpop.permute.xlu0 %1114
    %1116 = vrot.lane.b32.xlu0 %v1109, 9
    %v1117 = vpop.permute.xlu0 %1116
    %v1118 = vmul.f32 %v1111, %v478
    %v1119 = vmul.f32 %v1113, %v478
    %v1120 = vmul.f32 %v1115, %v478
    %v1121 = vmul.f32 %v1117, %v478
    %1122 = vrot.lane.b32.xlu0 %v1106, 8
    %v1123 = vpop.permute.xlu0 %1122
    %1124 = vrot.lane.b32.xlu0 %v1107, 8
    %v1125 = vpop.permute.xlu0 %1124
    %1126 = vrot.lane.b32.xlu0 %v1108, 8
    %v1127 = vpop.permute.xlu0 %1126
    %1128 = vrot.lane.b32.xlu0 %v1109, 8
    %v1129 = vpop.permute.xlu0 %1128
    %v1130 = vmul.f32 %v1123, %v485
    %v1131 = vmul.f32 %v1125, %v485
    %v1132 = vmul.f32 %v1127, %v485
    %v1133 = vmul.f32 %v1129, %v485
    %1134 = vrot.lane.b32.xlu0 %v1106, 7
    %v1135 = vpop.permute.xlu0 %1134
    %1136 = vrot.lane.b32.xlu0 %v1107, 7
    %v1137 = vpop.permute.xlu0 %1136
    %1138 = vrot.lane.b32.xlu0 %v1108, 7
    %v1139 = vpop.permute.xlu0 %1138
    %1140 = vrot.lane.b32.xlu0 %v1109, 7
    %v1141 = vpop.permute.xlu0 %1140
    %v1142 = vmul.f32 %v1135, %v492
    %v1143 = vmul.f32 %v1137, %v492
    %v1144 = vmul.f32 %v1139, %v492
    %v1145 = vmul.f32 %v1141, %v492
    %1146 = vrot.lane.b32.xlu0 %v1106, 1
    %v1147 = vpop.permute.xlu0 %1146
    %1148 = vrot.lane.b32.xlu0 %v1107, 1
    %v1149 = vpop.permute.xlu0 %1148
    %1150 = vrot.lane.b32.xlu0 %v1108, 1
    %v1151 = vpop.permute.xlu0 %1150
    %1152 = vrot.lane.b32.xlu0 %v1109, 1
    %v1153 = vpop.permute.xlu0 %1152
    %v1154 = vmul.f32 %v1147, %v499
    %v1155 = vmul.f32 %v1149, %v499
    %v1156 = vmul.f32 %v1151, %v499
    %v1157 = vmul.f32 %v1153, %v499
    %1158 = vrot.lane.b32.xlu0 %v1106, 127
    %v1159 = vpop.permute.xlu0 %1158
    %1160 = vrot.lane.b32.xlu0 %v1107, 127
    %v1161 = vpop.permute.xlu0 %1160
    %1162 = vrot.lane.b32.xlu0 %v1108, 127
    %v1163 = vpop.permute.xlu0 %1162
    %1164 = vrot.lane.b32.xlu0 %v1109, 127
    %v1165 = vpop.permute.xlu0 %1164
    %v1166 = vmul.f32 %v1159, %v506
    %v1167 = vmul.f32 %v1161, %v506
    %v1168 = vmul.f32 %v1163, %v506
    %v1169 = vmul.f32 %v1165, %v506
    %1170 = vrot.lane.b32.xlu0 %v1106, 121
    %v1171 = vpop.permute.xlu0 %1170
    %1172 = vrot.lane.b32.xlu0 %v1107, 121
    %v1173 = vpop.permute.xlu0 %1172
    %1174 = vrot.lane.b32.xlu0 %v1108, 121
    %v1175 = vpop.permute.xlu0 %1174
    %1176 = vrot.lane.b32.xlu0 %v1109, 121
    %v1177 = vpop.permute.xlu0 %1176
    %v1178 = vmul.f32 %v1171, %v513
    %v1179 = vmul.f32 %v1173, %v513
    %v1180 = vmul.f32 %v1175, %v513
    %v1181 = vmul.f32 %v1177, %v513
    %1182 = vrot.lane.b32.xlu0 %v1106, 120
    %v1183 = vpop.permute.xlu0 %1182
    %1184 = vrot.lane.b32.xlu0 %v1107, 120
    %v1185 = vpop.permute.xlu0 %1184
    %1186 = vrot.lane.b32.xlu0 %v1108, 120
    %v1187 = vpop.permute.xlu0 %1186
    %1188 = vrot.lane.b32.xlu0 %v1109, 120
    %v1189 = vpop.permute.xlu0 %1188
    %v1190 = vmul.f32 %v1183, %v520
    %v1191 = vmul.f32 %v1185, %v520
    %v1192 = vmul.f32 %v1187, %v520
    %v1193 = vmul.f32 %v1189, %v520
    %1194 = vrot.lane.b32.xlu0 %v1106, 119
    %v1195 = vpop.permute.xlu0 %1194
    %1196 = vrot.lane.b32.xlu0 %v1107, 119
    %v1197 = vpop.permute.xlu0 %1196
    %1198 = vrot.lane.b32.xlu0 %v1108, 119
    %v1199 = vpop.permute.xlu0 %1198
    %1200 = vrot.lane.b32.xlu0 %v1109, 119
    %v1201 = vpop.permute.xlu0 %1200
    %v1202 = vmul.f32 %v1195, %v527
    %v1203 = vmul.f32 %v1197, %v527
    %v1204 = vmul.f32 %v1199, %v527
    %v1205 = vmul.f32 %v1201, %v527
    %v1206 = vpack.c.bf16 %v1119, %v1118
    %v1207 = vpack.c.bf16 %v1121, %v1120
    %v1208 = vpack.c.bf16 %v1131, %v1130
    %v1209 = vpack.c.bf16 %v1133, %v1132
    %v1210 = vpack.c.bf16 %v1143, %v1142
    %v1211 = vpack.c.bf16 %v1145, %v1144
    %v1212 = vpack.c.bf16 %v1155, %v1154
    %v1213 = vpack.c.bf16 %v1157, %v1156
    %v1214 = vpack.c.bf16 %v1107, %v1106
    %v1215 = vpack.c.bf16 %v1109, %v1108
    %v1216 = vpack.c.bf16 %v1167, %v1166
    %v1217 = vpack.c.bf16 %v1169, %v1168
    %v1218 = vpack.c.bf16 %v1179, %v1178
    %v1219 = vpack.c.bf16 %v1181, %v1180
    %v1220 = vpack.c.bf16 %v1191, %v1190
    %v1221 = vpack.c.bf16 %v1193, %v1192
    %v1222 = vpack.c.bf16 %v1203, %v1202
    %v1223 = vpack.c.bf16 %v1205, %v1204
    %1224 = vset.pattern.permute.xlu0 8
    %1225 = vperm.xlu0 %1224, %v52
    %v1226 = vpop.permute.xlu0 %1225
    %v1230 = vunpack.c.l.b16 %v50
    %v1231 = vunpack.c.h.b16 %v50
    %v1232 = vunpack.c.l.b16 %v51
    %v1233 = vpack.c.b16 %v1230, %v1230
    %v1234 = vpack.c.b16 %v1231, %v1231
    %v1235 = vpack.c.b16 %v1232, %v1232
    %1236 = vrot.lane.b32.xlu0 %v1233, 116
    %v1237 = vpop.permute.xlu0 %1236
    %1238 = vrot.lane.b32.xlu0 %v1234, 116
    %v1239 = vpop.permute.xlu0 %1238
    %1240 = vrot.lane.b32.xlu0 %v1235, 116
    %v1241 = vpop.permute.xlu0 %1240
    %vm1242 = vcmask 949248
    %v1243 = vsel %vm1242, %v1237, %v1239
    %v1244 = vsel %vm1242, %v1239, %v1241
    %v1248 = vsel %vm169, %v1241, 0
    %1250 = vmatprep.subr.bf16.mxu0 0
    %1251 = vmatpush1.bf16.msra.mxu0 %v1213
    %1252 = vmatprep.subr.bf16.mxu0 0
    %1253 = vmatpush1.bf16.msra.mxu0 %v1212
    %1254 = vmatprep.subr.bf16.mxu0 0
    %1255 = vmatpush1.bf16.msra.mxu0 %v1211
    %1256 = vmatprep.subr.bf16.mxu0 0
    %1257 = vmatpush1.bf16.msra.mxu0 %v1210
    %1258 = vmatprep.subr.bf16.mxu0 0
    %1259 = vmatpush1.bf16.msra.mxu0 %v1209
    %1260 = vmatprep.subr.bf16.mxu0 0
    %1261 = vmatpush1.bf16.msra.mxu0 %v1208
    %1262 = vmatprep.subr.bf16.mxu0 0
    %1263 = vmatpush1.bf16.msra.mxu0 %v1207
    %1264 = vmatprep.subr.bf16.mxu0 0
    %1265 = vmatpush1.bf16.msra.mxu0 %v1206
    %1266 = vmatprep.subr.bf16.mxu0 0
    %1267 = vmatpush2.bf16.msra.mxu0 %v1221
    %1268 = vmatprep.subr.bf16.mxu0 0
    %1269 = vmatpush2.bf16.msra.mxu0 %v1220
    %1270 = vmatprep.subr.bf16.mxu0 0
    %1271 = vmatpush2.bf16.msra.mxu0 %v1219
    %1272 = vmatprep.subr.bf16.mxu0 0
    %1273 = vmatpush2.bf16.msra.mxu0 %v1218
    %1274 = vmatprep.subr.bf16.mxu0 0
    %1275 = vmatpush2.bf16.msra.mxu0 %v1217
    %1276 = vmatprep.subr.bf16.mxu0 0
    %1277 = vmatpush2.bf16.msra.mxu0 %v1216
    %1278 = vmatprep.subr.bf16.mxu0 0
    %1279 = vmatpush2.bf16.msra.mxu0 %v1215
    %1280 = vmatprep.subr.bf16.mxu0 0
    %1281 = vmatpush2.bf16.msra.mxu0 %v1214
    %1282 = vmatprep.mubr.bf16.mxu0 %v1244
    %1283 = vmatmul.mubr.bf16.gmra.mxu0 %v1243
    %v1284 = vpop.f32.mrf.mxu0
    %v1285 = vadd.f32 %v1226, %v1284
    %v1286 = vpop.f32.mrf.mxu0
    %v1287 = vpop.f32.mrf.mxu0
    %v1288 = vpop.f32.mrf.mxu0
    %1289 = vdwg.mxu0
    %1290 = vmatprep.subr.bf16.mxu0 0
    %1291 = vmatpush1.bf16.msra.mxu0 0
    %1292 = vmatprep.subr.bf16.mxu0 0
    %1293 = vmatpush1.bf16.msra.mxu0 0
    %1294 = vmatprep.subr.bf16.mxu0 0
    %1295 = vmatpush1.bf16.msra.mxu0 0
    %1296 = vmatprep.subr.bf16.mxu0 0
    %1297 = vmatpush1.bf16.msra.mxu0 0
    %1298 = vmatprep.subr.bf16.mxu0 0
    %1299 = vmatpush1.bf16.msra.mxu0 0
    %1300 = vmatprep.subr.bf16.mxu0 0
    %1301 = vmatpush1.bf16.msra.mxu0 0
    %1302 = vmatprep.subr.bf16.mxu0 0
    %1303 = vmatpush1.bf16.msra.mxu0 %v1223
    %1304 = vmatprep.subr.bf16.mxu0 0
    %1305 = vmatpush1.bf16.msra.mxu0 %v1222
    %1306 = vmatprep.subr.bf16.mxu0 0
    %1307 = vmatpush2.bf16.msra.mxu0 0
    %1308 = vmatprep.subr.bf16.mxu0 0
    %1309 = vmatpush2.bf16.msra.mxu0 0
    %1310 = vmatprep.subr.bf16.mxu0 0
    %1311 = vmatpush2.bf16.msra.mxu0 0
    %1312 = vmatprep.subr.bf16.mxu0 0
    %1313 = vmatpush2.bf16.msra.mxu0 0
    %1314 = vmatprep.subr.bf16.mxu0 0
    %1315 = vmatpush2.bf16.msra.mxu0 0
    %1316 = vmatprep.subr.bf16.mxu0 0
    %1317 = vmatpush2.bf16.msra.mxu0 0
    %1318 = vmatprep.subr.bf16.mxu0 0
    %1319 = vmatpush2.bf16.msra.mxu0 0
    %1320 = vmatprep.subr.bf16.mxu0 0
    %1321 = vmatpush2.bf16.msra.mxu0 0
    %1322 = vmatprep.mubr.bf16.mxu0 0
    %1323 = vmatmul.mubr.bf16.gmra.mxu0 %v1248
    %v1324 = vpop.f32.mrf.mxu0
    %v1325 = vadd.f32 %v1285, %v1324
    %v1326 = vpop.f32.mrf.mxu0
    %v1327 = vpop.f32.mrf.mxu0
    %v1328 = vpop.f32.mrf.mxu0
    %1329 = vdwg.mxu0
    %v1330 = vsub.f32 %v1325, %v33
    %v1331 = vmul.f32 %v1330, %v1330
    %v1332 = vsel %vm541, %v1331, 0.0
    %1333 = vadd.xlane.f32.xlu0 %v1332
    %v1334 = vpop.xlane.xlu0 %1333
    %v1335 = vrot.slane %v1334, 4
    %v1336 = vadd.f32 %v1334, %v1335
    %v1337 = vrot.slane %v1336, 2
    %v1338 = vadd.f32 %v1336, %v1337
    %v1339 = vrot.slane %v1338, 1
    %v1340 = vadd.f32 %v1338, %v1339
    %s1341 = vtos %v1340
    %s1342 = smul.f32 %s1341, 0.001953125
    %s1343 = scalar_lea.smem [#allocation2], 0
    %1344 = sst [smem:[%s1343]] %s1342
    // Predicated region
    $region34: #{diffusion_forward.1} parent=1 // pred_check
      _
    $region35: #{diffusion_forward.1} parent=1 // pred_check_branch
      %1346 = sbr.rel (0) target = $region37
    $region36: #{diffusion_forward.1} parent=1 // pred_region
      %s1348 = ssub.s32 16, 16
      %1349 = vsyncadd [#allocation3], %s1348
      %1352 = dma.smem_to_hbm [#allocation2], 16, %s8, [#allocation3]
    $region37: #{diffusion_forward.1} parent=1 // pred_fallthru
      _
    // Predicated region
    $region38: #{diffusion_forward.1} parent=1 // pred_check
      _
    $region39: #{diffusion_forward.1} parent=1 // pred_check_branch
      %1354 = sbr.rel (0) target = $region41
    $region40: #{diffusion_forward.1} parent=1 // pred_region
      %1355 = dma.done [#allocation3], 16
    $region41: #{diffusion_forward.1} parent=1 // pred_fallthru
      _
    %1356 = sfence
    %1357 = vsyncpa [#allocation3], 1

</llo_original>
